<compile_context>
chip_gen: v5e
topology: v5e:2x2
jax: 0.10.0
libtpu: 0.0.40
codegen_flags: <defaults>
</compile_context>

<pallas_src>
import math
from functools import partial

import numpy as np
import jax
import jax.numpy as jnp
from jax.experimental import pallas as pl
from jax.experimental.pallas import tpu as pltpu

# ---- hyper-parameters implied by the module (small, TPU-friendly sizes) ----
D_MODEL = 32
N_HEADS = 4
D_K = 8
D_V = 8
LN_EPS = 1e-5
NEG_INF = jnp.float32(-1e9)


# --------------------------------------------------------------------------
# shared in-kernel attention core (batch folded into rows AND keys)
# --------------------------------------------------------------------------
def _attention_core(q_proj, k_proj, v_proj, bias, residual,
                    wo_ref, bo_ref, gamma_ref, beta_ref,
                    out_ref, attn_ref, ctx_ref):
    """q/k/v_proj: (N, H*d) f32 with N = B*S (q already scaled by 1/sqrt(d_k)).
    bias: (N, N) additive bias (-1e9 on cross-batch blocks + padding mask).
    attn_ref: (N, H*N) lane-dense slab or None.  ctx_ref: (N, H*d_v) VMEM scratch.
    """
    N = q_proj.shape[0]
    for h in range(N_HEADS):                                # static unroll over heads
        qh = q_proj[:, h * D_K:(h + 1) * D_K]               # (N, D_K)
        kh = k_proj[:, h * D_K:(h + 1) * D_K]               # (N, D_K)
        vh = v_proj[:, h * D_V:(h + 1) * D_V]               # (N, D_V)

        # One 2-D MXU matmul per head over ALL batch rows & keys at once.
        scores = jnp.einsum('qd,kd->qk', qh, kh,
                            preferred_element_type=jnp.float32) + bias   # (N, N)

        # Numerically stable softmax; cross-batch / masked terms underflow to 0.
        m = jnp.max(scores, axis=-1, keepdims=True)
        e = jnp.exp(scores - m)
        attn = e / jnp.sum(e, axis=-1, keepdims=True)        # exact normalization

        if attn_ref is not None:
            attn_ref[:, h * N:(h + 1) * N] = attn            # direct per-head store

        # Per-head context written straight into the VMEM scratch (no concat).
        ctx_ref[:, h * D_V:(h + 1) * D_V] = jnp.dot(
            attn, vh, preferred_element_type=jnp.float32)

    # Output projection + residual + LayerNorm on all rows at once.
    out = jnp.dot(ctx_ref[...], wo_ref[...],
                  preferred_element_type=jnp.float32) + bo_ref[...]
    x = out + residual
    mean = jnp.mean(x, axis=-1, keepdims=True)
    var = jnp.mean((x - mean) ** 2, axis=-1, keepdims=True)
    y = (x - mean) * jax.lax.rsqrt(var + LN_EPS)
    out_ref[...] = y * gamma_ref[...] + beta_ref[...]


# --------------------------------------------------------------------------
# kernels (general Q/K/V path and fused-QKV self-attention fast path)
# --------------------------------------------------------------------------
def _make_mha_kernel(store_attn):
    def kernel(xq_ref, xk_ref, xv_ref, bias_ref,
               wq_ref, bq_ref, wk_ref, bk_ref, wv_ref, bv_ref,
               wo_ref, bo_ref, gamma_ref, beta_ref, *outs):
        if store_attn:
            out_ref, attn_ref, ctx_ref = outs
        else:
            out_ref, ctx_ref = outs
            attn_ref = None

        xq = xq_ref[...]                                     # also the residual
        scale = jnp.float32(1.0 / math.sqrt(D_K))
        # Projections: one MXU matmul each, all heads & batch rows; scale folded into Q.
        q_proj = (jnp.dot(xq, wq_ref[...],
                          preferred_element_type=jnp.float32) + bq_ref[...]) * scale
        k_proj = jnp.dot(xk_ref[...], wk_ref[...],
                         preferred_element_type=jnp.float32) + bk_ref[...]
        v_proj = jnp.dot(xv_ref[...], wv_ref[...],
                         preferred_element_type=jnp.float32) + bv_ref[...]

        _attention_core(q_proj, k_proj, v_proj, bias_ref[...], xq,
                        wo_ref, bo_ref, gamma_ref, beta_ref,
                        out_ref, attn_ref, ctx_ref)
    return kernel


def _make_self_attn_kernel(store_attn):
    def kernel(x_ref, bias_ref, wqkv_ref, bqkv_ref,
               wo_ref, bo_ref, gamma_ref, beta_ref, *outs):
        if store_attn:
            out_ref, attn_ref, ctx_ref = outs
        else:
            out_ref, ctx_ref = outs
            attn_ref = None

        x = x_ref[...]                                       # also the residual
        scale = jnp.float32(1.0 / math.sqrt(D_K))
        # Single fused Q|K|V projection: (N, 32) @ (32, 96) + bias, then 32-lane slices.
        proj = jnp.dot(x, wqkv_ref[...],
                       preferred_element_type=jnp.float32) + bqkv_ref[...]
        HK = N_HEADS * D_K
        HV = N_HEADS * D_V
        q_proj = proj[:, 0:HK] * scale
        k_proj = proj[:, HK:2 * HK]
        v_proj = proj[:, 2 * HK:2 * HK + HV]

        _attention_core(q_proj, k_proj, v_proj, bias_ref[...], x,
                        wo_ref, bo_ref, gamma_ref, beta_ref,
                        out_ref, attn_ref, ctx_ref)
    return kernel


# --------------------------------------------------------------------------
# wrappers
# --------------------------------------------------------------------------
def _block_bias(attn_mask, B, S):
    """(B,S,S) int mask -> (B*S, B*S) additive f32 bias: padding mask on the
    per-batch diagonal blocks, -1e9 on every cross-batch block."""
    mask_bias = jnp.where(attn_mask > 0, NEG_INF, jnp.float32(0.0))      # (B,S,S)
    same = jnp.eye(B, dtype=bool)                                        # (B,B)
    bias4 = jnp.where(same[:, None, :, None],                            # (B,1,B,1)
                      mask_bias[:, :, None, :],                          # (B,S,1,S)
                      NEG_INF)                                           # (B,S,B,S)
    return bias4.reshape(B * S, B * S)


def _unfold_attn(attn_slab, B, S):
    """(B*S, H*B*S) folded slab -> semantic (B, H, S, S) per-batch diagonal blocks."""
    attn5 = attn_slab.reshape(B, S, N_HEADS, B, S)
    idx = jnp.arange(B)
    attn = attn5[idx, :, :, idx, :]            # (B, S, H, S)
    return attn.transpose(0, 2, 1, 3)          # (B, H, S, S)


def _pallas_attention_call(kernel, inputs, N, return_attn):
    full2 = lambda i: (0, 0)
    in_specs = [pl.BlockSpec(x.shape, full2) for x in inputs]
    out_specs = [pl.BlockSpec((N, D_MODEL), full2)]
    out_shape = [jax.ShapeDtypeStruct((N, D_MODEL), jnp.float32)]
    if return_attn:
        out_specs.append(pl.BlockSpec((N, N_HEADS * N), full2))   # lane-dense slab
        out_shape.append(jax.ShapeDtypeStruct((N, N_HEADS * N), jnp.float32))
    return pl.pallas_call(
        kernel,
        grid=(1,),   # single step: whole problem + weights resident in VMEM
        in_specs=in_specs,
        out_specs=out_specs,
        out_shape=out_shape,
        scratch_shapes=[pltpu.VMEM((N, N_HEADS * D_V), jnp.float32)],
        compiler_params=pltpu.CompilerParams(dimension_semantics=("arbitrary",)),
    )(*inputs)


@partial(jax.jit, static_argnames=("return_attn",))
def multi_head_attention(Q, K, V, attn_mask, params, *, return_attn=True):
    """Q, K, V: (B, S, D_MODEL) f32; attn_mask: (B, S, S) int32 (1 == masked)."""
    B, S, _ = Q.shape
    N = B * S
    xq = Q.reshape(N, D_MODEL)
    xk = K.reshape(N, D_MODEL)
    xv = V.reshape(N, D_MODEL)
    bias = _block_bias(attn_mask, B, S)
    inputs = (xq, xk, xv, bias,
              params["wq"], params["bq"], params["wk"], params["bk"],
              params["wv"], params["bv"], params["wo"], params["bo"],
              params["gamma"], params["beta"])
    results = _pallas_attention_call(_make_mha_kernel(return_attn), inputs, N, return_attn)
    if return_attn:
        out2d, attn_slab = results
        return out2d.reshape(B, S, D_MODEL), _unfold_attn(attn_slab, B, S)
    (out2d,) = results
    return out2d.reshape(B, S, D_MODEL)


@partial(jax.jit, static_argnames=("return_attn",))
def multi_head_self_attention(X, attn_mask, params, *, return_attn=True):
    """Self-attention fast path (Q = K = V = X): fused Q|K|V projection."""
    B, S, _ = X.shape
    N = B * S
    x2 = X.reshape(N, D_MODEL)
    bias = _block_bias(attn_mask, B, S)
    wqkv = jnp.concatenate([params["wq"], params["wk"], params["wv"]], axis=1)
    bqkv = jnp.concatenate([params["bq"], params["bk"], params["bv"]], axis=1)
    inputs = (x2, bias, wqkv, bqkv,
              params["wo"], params["bo"], params["gamma"], params["beta"])
    results = _pallas_attention_call(_make_self_attn_kernel(return_attn),
                                     inputs, N, return_attn)
    if return_attn:
        out2d, attn_slab = results
        return out2d.reshape(B, S, D_MODEL), _unfold_attn(attn_slab, B, S)
    (out2d,) = results
    return out2d.reshape(B, S, D_MODEL)


# --------------------------------------------------------------------------
# pure-JAX reference mirroring the PyTorch forward semantics
# --------------------------------------------------------------------------
def reference_mha(Q, K, V, attn_mask, params):
    B, S, _ = Q.shape
    qp = Q @ params["wq"] + params["bq"]
    kp = K @ params["wk"] + params["bk"]
    vp = V @ params["wv"] + params["bv"]
    qh = qp.reshape(B, S, N_HEADS, D_K).transpose(0, 2, 1, 3)
    kh = kp.reshape(B, S, N_HEADS, D_K).transpose(0, 2, 1, 3)
    vh = vp.reshape(B, S, N_HEADS, D_V).transpose(0, 2, 1, 3)
    scores = jnp.einsum("bhqd,bhkd->bhqk", qh, kh) / math.sqrt(D_K)
    mask = (attn_mask[:, None, :, :] > 0)
    scores = jnp.where(mask, -1e9, scores)
    attn = jax.nn.softmax(scores, axis=-1)
    ctx = jnp.einsum("bhqk,bhkd->bhqd", attn, vh)
    ctx = ctx.transpose(0, 2, 1, 3).reshape(B, S, N_HEADS * D_V)
    out = ctx @ params["wo"] + params["bo"]
    x = out + Q
    mean = jnp.mean(x, axis=-1, keepdims=True)
    var = jnp.mean((x - mean) ** 2, axis=-1, keepdims=True)
    y = (x - mean) / jnp.sqrt(var + LN_EPS)
    return y * params["gamma"] + params["beta"], attn


def init_params(key):
    ks = jax.random.split(key, 4)
    scale = 0.02
    return {
        "wq": scale * jax.random.normal(ks[0], (D_MODEL, N_HEADS * D_K), jnp.float32),
        "bq": jnp.zeros((1, N_HEADS * D_K), jnp.float32),
        "wk": scale * jax.random.normal(ks[1], (D_MODEL, N_HEADS * D_K), jnp.float32),
        "bk": jnp.zeros((1, N_HEADS * D_K), jnp.float32),
        "wv": scale * jax.random.normal(ks[2], (D_MODEL, N_HEADS * D_V), jnp.float32),
        "bv": jnp.zeros((1, N_HEADS * D_V), jnp.float32),
        "wo": scale * jax.random.normal(ks[3], (N_HEADS * D_V, D_MODEL), jnp.float32),
        "bo": jnp.zeros((1, D_MODEL), jnp.float32),
        "gamma": jnp.ones((1, D_MODEL), jnp.float32),
        "beta": jnp.zeros((1, D_MODEL), jnp.float32),
    }


if __name__ == "__main__":
    B, S = 2, 8
    key = jax.random.PRNGKey(0)
    kq, kk, kv, kp = jax.random.split(key, 4)

    Q = jax.random.normal(kq, (B, S, D_MODEL), jnp.float32)
    K = jax.random.normal(kk, (B, S, D_MODEL), jnp.float32)
    V = jax.random.normal(kv, (B, S, D_MODEL), jnp.float32)

    # Padding-style attention mask: last two key positions are masked out.
    attn_mask = jnp.zeros((B, S, S), jnp.int32).at[:, :, -2:].set(1)

    params = init_params(kp)

    # General cross-attention path (distinct Q, K, V).
    out, attn = multi_head_attention(Q, K, V, attn_mask, params)
    out = jax.block_until_ready(out)
    attn = jax.block_until_ready(attn)
    ref_out, ref_attn = reference_mha(Q, K, V, attn_mask, params)
    np.testing.assert_allclose(np.asarray(out), np.asarray(ref_out), atol=1e-3, rtol=1e-3)
    np.testing.assert_allclose(np.asarray(attn), np.asarray(ref_attn), atol=1e-3, rtol=1e-3)

    # Self-attention fast path (fused Q|K|V projection).
    out_s, attn_s = multi_head_self_attention(Q, attn_mask, params)
    out_s = jax.block_until_ready(out_s)
    attn_s = jax.block_until_ready(attn_s)
    ref_out_s, ref_attn_s = reference_mha(Q, Q, Q, attn_mask, params)
    np.testing.assert_allclose(np.asarray(out_s), np.asarray(ref_out_s), atol=1e-3, rtol=1e-3)
    np.testing.assert_allclose(np.asarray(attn_s), np.asarray(ref_attn_s), atol=1e-3, rtol=1e-3)

    print("KERNEL_OK")
</pallas_src>

<mosaic_0001>
module attributes {stable_mosaic.version = 11 : i64} {
  func.func @kernel(%arg0: i32, %arg1: memref<16x32xf32, #tpu.memory_space<vmem>>, %arg2: memref<16x32xf32, #tpu.memory_space<vmem>>, %arg3: memref<16x32xf32, #tpu.memory_space<vmem>>, %arg4: memref<16x16xf32, #tpu.memory_space<vmem>>, %arg5: memref<32x32xf32, #tpu.memory_space<vmem>>, %arg6: memref<1x32xf32, #tpu.memory_space<vmem>>, %arg7: memref<32x32xf32, #tpu.memory_space<vmem>>, %arg8: memref<1x32xf32, #tpu.memory_space<vmem>>, %arg9: memref<32x32xf32, #tpu.memory_space<vmem>>, %arg10: memref<1x32xf32, #tpu.memory_space<vmem>>, %arg11: memref<32x32xf32, #tpu.memory_space<vmem>>, %arg12: memref<1x32xf32, #tpu.memory_space<vmem>>, %arg13: memref<1x32xf32, #tpu.memory_space<vmem>>, %arg14: memref<1x32xf32, #tpu.memory_space<vmem>>, %arg15: memref<16x32xf32, #tpu.memory_space<vmem>>, %arg16: memref<16x64xf32, #tpu.memory_space<vmem>>, %arg17: memref<16x32xf32, #tpu.memory_space<vmem>>) attributes {dimension_semantics = [#tpu.dimension_semantics<arbitrary>], iteration_bounds = array<i64: 1>, scalar_prefetch = 0 : i64, scratch_operands = 1 : i64, tpu.core_type = #tpu.core_type<tc>, window_params = [{pipeline_mode = #tpu.pipeline_mode<synchronous>, transform_indices = @transform_0, window_bounds = array<i64: 16, 32>}, {pipeline_mode = #tpu.pipeline_mode<synchronous>, transform_indices = @transform_1, window_bounds = array<i64: 16, 32>}, {pipeline_mode = #tpu.pipeline_mode<synchronous>, transform_indices = @transform_2, window_bounds = array<i64: 16, 32>}, {pipeline_mode = #tpu.pipeline_mode<synchronous>, transform_indices = @transform_3, window_bounds = array<i64: 16, 16>}, {pipeline_mode = #tpu.pipeline_mode<synchronous>, transform_indices = @transform_4, window_bounds = array<i64: 32, 32>}, {pipeline_mode = #tpu.pipeline_mode<synchronous>, transform_indices = @transform_5, window_bounds = array<i64: 1, 32>}, {pipeline_mode = #tpu.pipeline_mode<synchronous>, transform_indices = @transform_6, window_bounds = array<i64: 32, 32>}, {pipeline_mode = #tpu.pipeline_mode<synchronous>, transform_indices = @transform_7, window_bounds = array<i64: 1, 32>}, {pipeline_mode = #tpu.pipeline_mode<synchronous>, transform_indices = @transform_8, window_bounds = array<i64: 32, 32>}, {pipeline_mode = #tpu.pipeline_mode<synchronous>, transform_indices = @transform_9, window_bounds = array<i64: 1, 32>}, {pipeline_mode = #tpu.pipeline_mode<synchronous>, transform_indices = @transform_10, window_bounds = array<i64: 32, 32>}, {pipeline_mode = #tpu.pipeline_mode<synchronous>, transform_indices = @transform_11, window_bounds = array<i64: 1, 32>}, {pipeline_mode = #tpu.pipeline_mode<synchronous>, transform_indices = @transform_12, window_bounds = array<i64: 1, 32>}, {pipeline_mode = #tpu.pipeline_mode<synchronous>, transform_indices = @transform_13, window_bounds = array<i64: 1, 32>}, {pipeline_mode = #tpu.pipeline_mode<synchronous>, transform_indices = @transform_14, window_bounds = array<i64: 16, 32>}, {pipeline_mode = #tpu.pipeline_mode<synchronous>, transform_indices = @transform_15, window_bounds = array<i64: 16, 64>}]} {
    %c0 = arith.constant 0 : index
    %c0_0 = arith.constant 0 : index
    %0 = vector.load %arg1[%c0, %c0_0] : memref<16x32xf32, #tpu.memory_space<vmem>>, vector<16x32xf32>
    %c0_1 = arith.constant 0 : index
    %c0_2 = arith.constant 0 : index
    %1 = vector.load %arg5[%c0_1, %c0_2] : memref<32x32xf32, #tpu.memory_space<vmem>>, vector<32x32xf32>
    %cst = arith.constant dense<0.000000e+00> : vector<16x32xf32>
    %2 = tpu.matmul %0, %1, %cst {dimension_numbers = #tpu.dot_dimension_numbers<[1], [0], [0], [1], [0, 0, 1, 1], [], []>} : vector<16x32xf32>, vector<32x32xf32>, vector<16x32xf32> -> vector<16x32xf32>
    %c0_3 = arith.constant 0 : index
    %c0_4 = arith.constant 0 : index
    %3 = vector.load %arg6[%c0_3, %c0_4] : memref<1x32xf32, #tpu.memory_space<vmem>>, vector<1x32xf32>
    %4 = vector.broadcast %3 : vector<1x32xf32> to vector<16x32xf32>
    %5 = arith.addf %2, %4 : vector<16x32xf32>
    %cst_5 = arith.constant 0.353553385 : f32
    %6 = vector.broadcast %cst_5 : f32 to vector<16x32xf32>
    %7 = arith.mulf %5, %6 : vector<16x32xf32>
    %c0_6 = arith.constant 0 : index
    %c0_7 = arith.constant 0 : index
    %8 = vector.load %arg2[%c0_6, %c0_7] : memref<16x32xf32, #tpu.memory_space<vmem>>, vector<16x32xf32>
    %c0_8 = arith.constant 0 : index
    %c0_9 = arith.constant 0 : index
    %9 = vector.load %arg7[%c0_8, %c0_9] : memref<32x32xf32, #tpu.memory_space<vmem>>, vector<32x32xf32>
    %cst_10 = arith.constant dense<0.000000e+00> : vector<16x32xf32>
    %10 = tpu.matmul %8, %9, %cst_10 {dimension_numbers = #tpu.dot_dimension_numbers<[1], [0], [0], [1], [0, 0, 1, 1], [], []>} : vector<16x32xf32>, vector<32x32xf32>, vector<16x32xf32> -> vector<16x32xf32>
    %c0_11 = arith.constant 0 : index
    %c0_12 = arith.constant 0 : index
    %11 = vector.load %arg8[%c0_11, %c0_12] : memref<1x32xf32, #tpu.memory_space<vmem>>, vector<1x32xf32>
    %12 = vector.broadcast %11 : vector<1x32xf32> to vector<16x32xf32>
    %13 = arith.addf %10, %12 : vector<16x32xf32>
    %c0_13 = arith.constant 0 : index
    %c0_14 = arith.constant 0 : index
    %14 = vector.load %arg3[%c0_13, %c0_14] : memref<16x32xf32, #tpu.memory_space<vmem>>, vector<16x32xf32>
    %c0_15 = arith.constant 0 : index
    %c0_16 = arith.constant 0 : index
    %15 = vector.load %arg9[%c0_15, %c0_16] : memref<32x32xf32, #tpu.memory_space<vmem>>, vector<32x32xf32>
    %cst_17 = arith.constant dense<0.000000e+00> : vector<16x32xf32>
    %16 = tpu.matmul %14, %15, %cst_17 {dimension_numbers = #tpu.dot_dimension_numbers<[1], [0], [0], [1], [0, 0, 1, 1], [], []>} : vector<16x32xf32>, vector<32x32xf32>, vector<16x32xf32> -> vector<16x32xf32>
    %c0_18 = arith.constant 0 : index
    %c0_19 = arith.constant 0 : index
    %17 = vector.load %arg10[%c0_18, %c0_19] : memref<1x32xf32, #tpu.memory_space<vmem>>, vector<1x32xf32>
    %18 = vector.broadcast %17 : vector<1x32xf32> to vector<16x32xf32>
    %19 = arith.addf %16, %18 : vector<16x32xf32>
    %c0_20 = arith.constant 0 : index
    %c0_21 = arith.constant 0 : index
    %20 = vector.load %arg4[%c0_20, %c0_21] : memref<16x16xf32, #tpu.memory_space<vmem>>, vector<16x16xf32>
    %21 = vector.extract_strided_slice %7 {offsets = [0, 0], sizes = [16, 8], strides = [1, 1]} : vector<16x32xf32> to vector<16x8xf32>
    %22 = vector.extract_strided_slice %13 {offsets = [0, 0], sizes = [16, 8], strides = [1, 1]} : vector<16x32xf32> to vector<16x8xf32>
    %23 = vector.extract_strided_slice %19 {offsets = [0, 0], sizes = [16, 8], strides = [1, 1]} : vector<16x32xf32> to vector<16x8xf32>
    "tpu.trace_start"() <{level = 10 : i32, message = "qd,kd->qk"}> : () -> ()
    %cst_22 = arith.constant dense<0.000000e+00> : vector<16x16xf32>
    %24 = tpu.matmul %21, %22, %cst_22 {dimension_numbers = #tpu.dot_dimension_numbers<[1], [1], [0], [0], [0, 0, 1, 0], [], []>} : vector<16x8xf32>, vector<16x8xf32>, vector<16x16xf32> -> vector<16x16xf32>
    "tpu.trace_stop"() : () -> ()
    %25 = arith.addf %24, %20 : vector<16x16xf32>
    %cst_23 = arith.constant dense<0xFF800000> : vector<16xf32>
    %26 = vector.multi_reduction <maximumf>, %25, %cst_23 [1] : vector<16x16xf32> to vector<16xf32>
    %27 = vector.shape_cast %26 : vector<16xf32> to vector<16x1xf32>
    %28 = vector.broadcast %27 : vector<16x1xf32> to vector<16x16xf32>
    %29 = arith.subf %25, %28 : vector<16x16xf32>
    %30 = math.exp %29 : vector<16x16xf32>
    %cst_24 = arith.constant dense<0.000000e+00> : vector<16xf32>
    %31 = vector.multi_reduction <add>, %30, %cst_24 [1] : vector<16x16xf32> to vector<16xf32>
    %32 = vector.shape_cast %31 : vector<16xf32> to vector<16x1xf32>
    %33 = vector.broadcast %32 : vector<16x1xf32> to vector<16x16xf32>
    %34 = arith.divf %30, %33 : vector<16x16xf32>
    %c0_25 = arith.constant 0 : index
    %c0_26 = arith.constant 0 : index
    %35 = vector.load %arg16[%c0_25, %c0_26] : memref<16x64xf32, #tpu.memory_space<vmem>>, vector<16x16xf32>
    tpu.vector_store %arg16[%c0_25, %c0_26], %34 {strides = array<i32>} : memref<16x64xf32, #tpu.memory_space<vmem>>, vector<16x16xf32>,
    %cst_27 = arith.constant dense<0.000000e+00> : vector<16x8xf32>
    %36 = tpu.matmul %34, %23, %cst_27 {dimension_numbers = #tpu.dot_dimension_numbers<[1], [0], [0], [1], [0, 0, 1, 1], [], []>} : vector<16x16xf32>, vector<16x8xf32>, vector<16x8xf32> -> vector<16x8xf32>
    %c0_28 = arith.constant 0 : index
    %c0_29 = arith.constant 0 : index
    %37 = vector.load %arg17[%c0_28, %c0_29] : memref<16x32xf32, #tpu.memory_space<vmem>>, vector<16x8xf32>
    tpu.vector_store %arg17[%c0_28, %c0_29], %36 {strides = array<i32>} : memref<16x32xf32, #tpu.memory_space<vmem>>, vector<16x8xf32>,
    %38 = vector.extract_strided_slice %7 {offsets = [0, 8], sizes = [16, 8], strides = [1, 1]} : vector<16x32xf32> to vector<16x8xf32>
    %39 = vector.extract_strided_slice %13 {offsets = [0, 8], sizes = [16, 8], strides = [1, 1]} : vector<16x32xf32> to vector<16x8xf32>
    %40 = vector.extract_strided_slice %19 {offsets = [0, 8], sizes = [16, 8], strides = [1, 1]} : vector<16x32xf32> to vector<16x8xf32>
    "tpu.trace_start"() <{level = 10 : i32, message = "qd,kd->qk"}> : () -> ()
    %cst_30 = arith.constant dense<0.000000e+00> : vector<16x16xf32>
    %41 = tpu.matmul %38, %39, %cst_30 {dimension_numbers = #tpu.dot_dimension_numbers<[1], [1], [0], [0], [0, 0, 1, 0], [], []>} : vector<16x8xf32>, vector<16x8xf32>, vector<16x16xf32> -> vector<16x16xf32>
    "tpu.trace_stop"() : () -> ()
    %42 = arith.addf %41, %20 : vector<16x16xf32>
    %cst_31 = arith.constant dense<0xFF800000> : vector<16xf32>
    %43 = vector.multi_reduction <maximumf>, %42, %cst_31 [1] : vector<16x16xf32> to vector<16xf32>
    %44 = vector.shape_cast %43 : vector<16xf32> to vector<16x1xf32>
    %45 = vector.broadcast %44 : vector<16x1xf32> to vector<16x16xf32>
    %46 = arith.subf %42, %45 : vector<16x16xf32>
    %47 = math.exp %46 : vector<16x16xf32>
    %cst_32 = arith.constant dense<0.000000e+00> : vector<16xf32>
    %48 = vector.multi_reduction <add>, %47, %cst_32 [1] : vector<16x16xf32> to vector<16xf32>
    %49 = vector.shape_cast %48 : vector<16xf32> to vector<16x1xf32>
    %50 = vector.broadcast %49 : vector<16x1xf32> to vector<16x16xf32>
    %51 = arith.divf %47, %50 : vector<16x16xf32>
    %c0_33 = arith.constant 0 : index
    %c16 = arith.constant 16 : index
    %52 = vector.load %arg16[%c0_33, %c16] : memref<16x64xf32, #tpu.memory_space<vmem>>, vector<16x16xf32>
    tpu.vector_store %arg16[%c0_33, %c16], %51 {strides = array<i32>} : memref<16x64xf32, #tpu.memory_space<vmem>>, vector<16x16xf32>,
    %cst_34 = arith.constant dense<0.000000e+00> : vector<16x8xf32>
    %53 = tpu.matmul %51, %40, %cst_34 {dimension_numbers = #tpu.dot_dimension_numbers<[1], [0], [0], [1], [0, 0, 1, 1], [], []>} : vector<16x16xf32>, vector<16x8xf32>, vector<16x8xf32> -> vector<16x8xf32>
    %c0_35 = arith.constant 0 : index
    %c8 = arith.constant 8 : index
    %54 = vector.load %arg17[%c0_35, %c8] : memref<16x32xf32, #tpu.memory_space<vmem>>, vector<16x8xf32>
    tpu.vector_store %arg17[%c0_35, %c8], %53 {strides = array<i32>} : memref<16x32xf32, #tpu.memory_space<vmem>>, vector<16x8xf32>,
    %55 = vector.extract_strided_slice %7 {offsets = [0, 16], sizes = [16, 8], strides = [1, 1]} : vector<16x32xf32> to vector<16x8xf32>
    %56 = vector.extract_strided_slice %13 {offsets = [0, 16], sizes = [16, 8], strides = [1, 1]} : vector<16x32xf32> to vector<16x8xf32>
    %57 = vector.extract_strided_slice %19 {offsets = [0, 16], sizes = [16, 8], strides = [1, 1]} : vector<16x32xf32> to vector<16x8xf32>
    "tpu.trace_start"() <{level = 10 : i32, message = "qd,kd->qk"}> : () -> ()
    %cst_36 = arith.constant dense<0.000000e+00> : vector<16x16xf32>
    %58 = tpu.matmul %55, %56, %cst_36 {dimension_numbers = #tpu.dot_dimension_numbers<[1], [1], [0], [0], [0, 0, 1, 0], [], []>} : vector<16x8xf32>, vector<16x8xf32>, vector<16x16xf32> -> vector<16x16xf32>
    "tpu.trace_stop"() : () -> ()
    %59 = arith.addf %58, %20 : vector<16x16xf32>
    %cst_37 = arith.constant dense<0xFF800000> : vector<16xf32>
    %60 = vector.multi_reduction <maximumf>, %59, %cst_37 [1] : vector<16x16xf32> to vector<16xf32>
    %61 = vector.shape_cast %60 : vector<16xf32> to vector<16x1xf32>
    %62 = vector.broadcast %61 : vector<16x1xf32> to vector<16x16xf32>
    %63 = arith.subf %59, %62 : vector<16x16xf32>
    %64 = math.exp %63 : vector<16x16xf32>
    %cst_38 = arith.constant dense<0.000000e+00> : vector<16xf32>
    %65 = vector.multi_reduction <add>, %64, %cst_38 [1] : vector<16x16xf32> to vector<16xf32>
    %66 = vector.shape_cast %65 : vector<16xf32> to vector<16x1xf32>
    %67 = vector.broadcast %66 : vector<16x1xf32> to vector<16x16xf32>
    %68 = arith.divf %64, %67 : vector<16x16xf32>
    %c0_39 = arith.constant 0 : index
    %c32 = arith.constant 32 : index
    %69 = vector.load %arg16[%c0_39, %c32] : memref<16x64xf32, #tpu.memory_space<vmem>>, vector<16x16xf32>
    tpu.vector_store %arg16[%c0_39, %c32], %68 {strides = array<i32>} : memref<16x64xf32, #tpu.memory_space<vmem>>, vector<16x16xf32>,
    %cst_40 = arith.constant dense<0.000000e+00> : vector<16x8xf32>
    %70 = tpu.matmul %68, %57, %cst_40 {dimension_numbers = #tpu.dot_dimension_numbers<[1], [0], [0], [1], [0, 0, 1, 1], [], []>} : vector<16x16xf32>, vector<16x8xf32>, vector<16x8xf32> -> vector<16x8xf32>
    %c0_41 = arith.constant 0 : index
    %c16_42 = arith.constant 16 : index
    %71 = vector.load %arg17[%c0_41, %c16_42] : memref<16x32xf32, #tpu.memory_space<vmem>>, vector<16x8xf32>
    tpu.vector_store %arg17[%c0_41, %c16_42], %70 {strides = array<i32>} : memref<16x32xf32, #tpu.memory_space<vmem>>, vector<16x8xf32>,
    %72 = vector.extract_strided_slice %7 {offsets = [0, 24], sizes = [16, 8], strides = [1, 1]} : vector<16x32xf32> to vector<16x8xf32>
    %73 = vector.extract_strided_slice %13 {offsets = [0, 24], sizes = [16, 8], strides = [1, 1]} : vector<16x32xf32> to vector<16x8xf32>
    %74 = vector.extract_strided_slice %19 {offsets = [0, 24], sizes = [16, 8], strides = [1, 1]} : vector<16x32xf32> to vector<16x8xf32>
    "tpu.trace_start"() <{level = 10 : i32, message = "qd,kd->qk"}> : () -> ()
    %cst_43 = arith.constant dense<0.000000e+00> : vector<16x16xf32>
    %75 = tpu.matmul %72, %73, %cst_43 {dimension_numbers = #tpu.dot_dimension_numbers<[1], [1], [0], [0], [0, 0, 1, 0], [], []>} : vector<16x8xf32>, vector<16x8xf32>, vector<16x16xf32> -> vector<16x16xf32>
    "tpu.trace_stop"() : () -> ()
    %76 = arith.addf %75, %20 : vector<16x16xf32>
    %cst_44 = arith.constant dense<0xFF800000> : vector<16xf32>
    %77 = vector.multi_reduction <maximumf>, %76, %cst_44 [1] : vector<16x16xf32> to vector<16xf32>
    %78 = vector.shape_cast %77 : vector<16xf32> to vector<16x1xf32>
    %79 = vector.broadcast %78 : vector<16x1xf32> to vector<16x16xf32>
    %80 = arith.subf %76, %79 : vector<16x16xf32>
    %81 = math.exp %80 : vector<16x16xf32>
    %cst_45 = arith.constant dense<0.000000e+00> : vector<16xf32>
    %82 = vector.multi_reduction <add>, %81, %cst_45 [1] : vector<16x16xf32> to vector<16xf32>
    %83 = vector.shape_cast %82 : vector<16xf32> to vector<16x1xf32>
    %84 = vector.broadcast %83 : vector<16x1xf32> to vector<16x16xf32>
    %85 = arith.divf %81, %84 : vector<16x16xf32>
    %c0_46 = arith.constant 0 : index
    %c48 = arith.constant 48 : index
    %86 = vector.load %arg16[%c0_46, %c48] : memref<16x64xf32, #tpu.memory_space<vmem>>, vector<16x16xf32>
    tpu.vector_store %arg16[%c0_46, %c48], %85 {strides = array<i32>} : memref<16x64xf32, #tpu.memory_space<vmem>>, vector<16x16xf32>,
    %cst_47 = arith.constant dense<0.000000e+00> : vector<16x8xf32>
    %87 = tpu.matmul %85, %74, %cst_47 {dimension_numbers = #tpu.dot_dimension_numbers<[1], [0], [0], [1], [0, 0, 1, 1], [], []>} : vector<16x16xf32>, vector<16x8xf32>, vector<16x8xf32> -> vector<16x8xf32>
    %c0_48 = arith.constant 0 : index
    %c24 = arith.constant 24 : index
    %88 = vector.load %arg17[%c0_48, %c24] : memref<16x32xf32, #tpu.memory_space<vmem>>, vector<16x8xf32>
    tpu.vector_store %arg17[%c0_48, %c24], %87 {strides = array<i32>} : memref<16x32xf32, #tpu.memory_space<vmem>>, vector<16x8xf32>,
    %c0_49 = arith.constant 0 : index
    %c0_50 = arith.constant 0 : index
    %89 = vector.load %arg17[%c0_49, %c0_50] : memref<16x32xf32, #tpu.memory_space<vmem>>, vector<16x32xf32>
    %c0_51 = arith.constant 0 : index
    %c0_52 = arith.constant 0 : index
    %90 = vector.load %arg11[%c0_51, %c0_52] : memref<32x32xf32, #tpu.memory_space<vmem>>, vector<32x32xf32>
    %cst_53 = arith.constant dense<0.000000e+00> : vector<16x32xf32>
    %91 = tpu.matmul %89, %90, %cst_53 {dimension_numbers = #tpu.dot_dimension_numbers<[1], [0], [0], [1], [0, 0, 1, 1], [], []>} : vector<16x32xf32>, vector<32x32xf32>, vector<16x32xf32> -> vector<16x32xf32>
    %c0_54 = arith.constant 0 : index
    %c0_55 = arith.constant 0 : index
    %92 = vector.load %arg12[%c0_54, %c0_55] : memref<1x32xf32, #tpu.memory_space<vmem>>, vector<1x32xf32>
    %93 = vector.broadcast %92 : vector<1x32xf32> to vector<16x32xf32>
    %94 = arith.addf %91, %93 : vector<16x32xf32>
    %95 = arith.addf %94, %0 : vector<16x32xf32>
    %cst_56 = arith.constant dense<0.000000e+00> : vector<16xf32>
    %96 = vector.multi_reduction <add>, %95, %cst_56 [1] : vector<16x32xf32> to vector<16xf32>
    %97 = vector.shape_cast %96 : vector<16xf32> to vector<16x1xf32>
    %cst_57 = arith.constant 3.200000e+01 : f32
    %98 = vector.broadcast %cst_57 : f32 to vector<16x1xf32>
    %99 = arith.divf %97, %98 : vector<16x1xf32>
    %100 = vector.broadcast %99 : vector<16x1xf32> to vector<16x32xf32>
    %101 = arith.subf %95, %100 : vector<16x32xf32>
    %102 = arith.mulf %101, %101 : vector<16x32xf32>
    %cst_58 = arith.constant dense<0.000000e+00> : vector<16xf32>
    %103 = vector.multi_reduction <add>, %102, %cst_58 [1] : vector<16x32xf32> to vector<16xf32>
    %104 = vector.shape_cast %103 : vector<16xf32> to vector<16x1xf32>
    %cst_59 = arith.constant 3.200000e+01 : f32
    %105 = vector.broadcast %cst_59 : f32 to vector<16x1xf32>
    %106 = arith.divf %104, %105 : vector<16x1xf32>
    %107 = vector.broadcast %99 : vector<16x1xf32> to vector<16x32xf32>
    %108 = arith.subf %95, %107 : vector<16x32xf32>
    %cst_60 = arith.constant 9.99999974E-6 : f32
    %109 = vector.broadcast %cst_60 : f32 to vector<16x1xf32>
    %110 = arith.addf %106, %109 : vector<16x1xf32>
    %111 = math.rsqrt %110 : vector<16x1xf32>
    %112 = vector.broadcast %111 : vector<16x1xf32> to vector<16x32xf32>
    %113 = arith.mulf %108, %112 : vector<16x32xf32>
    %c0_61 = arith.constant 0 : index
    %c0_62 = arith.constant 0 : index
    %114 = vector.load %arg13[%c0_61, %c0_62] : memref<1x32xf32, #tpu.memory_space<vmem>>, vector<1x32xf32>
    %115 = vector.broadcast %114 : vector<1x32xf32> to vector<16x32xf32>
    %116 = arith.mulf %113, %115 : vector<16x32xf32>
    %c0_63 = arith.constant 0 : index
    %c0_64 = arith.constant 0 : index
    %117 = vector.load %arg14[%c0_63, %c0_64] : memref<1x32xf32, #tpu.memory_space<vmem>>, vector<1x32xf32>
    %118 = vector.broadcast %117 : vector<1x32xf32> to vector<16x32xf32>
    %119 = arith.addf %116, %118 : vector<16x32xf32>
    %c0_65 = arith.constant 0 : index
    %c0_66 = arith.constant 0 : index
    %120 = vector.load %arg15[%c0_65, %c0_66] : memref<16x32xf32, #tpu.memory_space<vmem>>, vector<16x32xf32>
    tpu.vector_store %arg15[%c0_65, %c0_66], %119 {strides = array<i32>} : memref<16x32xf32, #tpu.memory_space<vmem>>, vector<16x32xf32>,
    return
  }
  func.func @transform_0(%arg0: i32) -> (i32, i32) {
    %c0_i32 = arith.constant 0 : i32
    %c0_i32_0 = arith.constant 0 : i32
    %c0_i32_1 = arith.constant 0 : i32
    return %c0_i32, %c0_i32_0 : i32, i32
  }
  func.func @transform_1(%arg0: i32) -> (i32, i32) {
    %c0_i32 = arith.constant 0 : i32
    %c0_i32_0 = arith.constant 0 : i32
    %c0_i32_1 = arith.constant 0 : i32
    return %c0_i32, %c0_i32_0 : i32, i32
  }
  func.func @transform_2(%arg0: i32) -> (i32, i32) {
    %c0_i32 = arith.constant 0 : i32
    %c0_i32_0 = arith.constant 0 : i32
    %c0_i32_1 = arith.constant 0 : i32
    return %c0_i32, %c0_i32_0 : i32, i32
  }
  func.func @transform_3(%arg0: i32) -> (i32, i32) {
    %c0_i32 = arith.constant 0 : i32
    %c0_i32_0 = arith.constant 0 : i32
    %c0_i32_1 = arith.constant 0 : i32
    return %c0_i32, %c0_i32_0 : i32, i32
  }
  func.func @transform_4(%arg0: i32) -> (i32, i32) {
    %c0_i32 = arith.constant 0 : i32
    %c0_i32_0 = arith.constant 0 : i32
    %c0_i32_1 = arith.constant 0 : i32
    return %c0_i32, %c0_i32_0 : i32, i32
  }
  func.func @transform_5(%arg0: i32) -> (i32, i32) {
    %c0_i32 = arith.constant 0 : i32
    %c0_i32_0 = arith.constant 0 : i32
    %c0_i32_1 = arith.constant 0 : i32
    return %c0_i32, %c0_i32_0 : i32, i32
  }
  func.func @transform_6(%arg0: i32) -> (i32, i32) {
    %c0_i32 = arith.constant 0 : i32
    %c0_i32_0 = arith.constant 0 : i32
    %c0_i32_1 = arith.constant 0 : i32
    return %c0_i32, %c0_i32_0 : i32, i32
  }
  func.func @transform_7(%arg0: i32) -> (i32, i32) {
    %c0_i32 = arith.constant 0 : i32
    %c0_i32_0 = arith.constant 0 : i32
    %c0_i32_1 = arith.constant 0 : i32
    return %c0_i32, %c0_i32_0 : i32, i32
  }
  func.func @transform_8(%arg0: i32) -> (i32, i32) {
    %c0_i32 = arith.constant 0 : i32
    %c0_i32_0 = arith.constant 0 : i32
    %c0_i32_1 = arith.constant 0 : i32
    return %c0_i32, %c0_i32_0 : i32, i32
  }
  func.func @transform_9(%arg0: i32) -> (i32, i32) {
    %c0_i32 = arith.constant 0 : i32
    %c0_i32_0 = arith.constant 0 : i32
    %c0_i32_1 = arith.constant 0 : i32
    return %c0_i32, %c0_i32_0 : i32, i32
  }
  func.func @transform_10(%arg0: i32) -> (i32, i32) {
    %c0_i32 = arith.constant 0 : i32
    %c0_i32_0 = arith.constant 0 : i32
    %c0_i32_1 = arith.constant 0 : i32
    return %c0_i32, %c0_i32_0 : i32, i32
  }
  func.func @transform_11(%arg0: i32) -> (i32, i32) {
    %c0_i32 = arith.constant 0 : i32
    %c0_i32_0 = arith.constant 0 : i32
    %c0_i32_1 = arith.constant 0 : i32
    return %c0_i32, %c0_i32_0 : i32, i32
  }
  func.func @transform_12(%arg0: i32) -> (i32, i32) {
    %c0_i32 = arith.constant 0 : i32
    %c0_i32_0 = arith.constant 0 : i32
    %c0_i32_1 = arith.constant 0 : i32
    return %c0_i32, %c0_i32_0 : i32, i32
  }
  func.func @transform_13(%arg0: i32) -> (i32, i32) {
    %c0_i32 = arith.constant 0 : i32
    %c0_i32_0 = arith.constant 0 : i32
    %c0_i32_1 = arith.constant 0 : i32
    return %c0_i32, %c0_i32_0 : i32, i32
  }
  func.func @transform_14(%arg0: i32) -> (i32, i32) {
    %c0_i32 = arith.constant 0 : i32
    %c0_i32_0 = arith.constant 0 : i32
    %c0_i32_1 = arith.constant 0 : i32
    return %c0_i32, %c0_i32_0 : i32, i32
  }
  func.func @transform_15(%arg0: i32) -> (i32, i32) {
    %c0_i32 = arith.constant 0 : i32
    %c0_i32_0 = arith.constant 0 : i32
    %c0_i32_1 = arith.constant 0 : i32
    return %c0_i32, %c0_i32_0 : i32, i32
  }
}

</mosaic_0001>

<llo_original>
// kernel: multi_head_attention.1
$region0: #{multi_head_attention.1}
  #allocation0 [shape = 'u32[]', space=smem, size = 0x4, offset = 0x4, fixed_abs, tag = 'smem constant byte address 0x4 - core index']
  #allocation1 [shape = 'u32[72,128]{1,0:T(1,128)}', space=vmem, size = 0x9000, scoped, tag = 'internal scratch']
  #allocation2 [shape = 'f32[16,32]{1,0:T(8,128)}', space=vmem, size = 0x2000, scoped, tag = 'scratch operand']
  %s0 = inlined_call_operand.vmem [shape: f32[16,32], index: 0, kind: input, shape index: {}]
  %s1 = inlined_call_operand.hbm [shape: f32[16,32], index: 1, kind: input, shape index: {}]
  %s2 = inlined_call_operand.hbm [shape: f32[16,32], index: 2, kind: input, shape index: {}]
  %s3 = inlined_call_operand.vmem [shape: f32[16,16], index: 3, kind: input, shape index: {}]
  %s4 = inlined_call_operand.vmem [shape: f32[32,32], index: 4, kind: input, shape index: {}]
  %s5 = inlined_call_operand.hbm [shape: f32[1,32], index: 5, kind: input, shape index: {}]
  %s6 = inlined_call_operand.vmem [shape: f32[32,32], index: 6, kind: input, shape index: {}]
  %s7 = inlined_call_operand.hbm [shape: f32[1,32], index: 7, kind: input, shape index: {}]
  %s8 = inlined_call_operand.vmem [shape: f32[32,32], index: 8, kind: input, shape index: {}]
  %s9 = inlined_call_operand.hbm [shape: f32[1,32], index: 9, kind: input, shape index: {}]
  %s10 = inlined_call_operand.vmem [shape: f32[32,32], index: 10, kind: input, shape index: {}]
  %s11 = inlined_call_operand.hbm [shape: f32[1,32], index: 11, kind: input, shape index: {}]
  %s12 = inlined_call_operand.hbm [shape: f32[1,32], index: 12, kind: input, shape index: {}]
  %s13 = inlined_call_operand.hbm [shape: f32[1,32], index: 13, kind: input, shape index: {}]
  %s14 = inlined_call_operand.hbm [shape: f32[16,32], index: 14, kind: output, shape index: {0}]
  %s15 = inlined_call_operand.vmem [shape: f32[16,64], index: 15, kind: output, shape index: {1}]
  %16 = xla_tuple %s14, %s15
  %s17 = sld [smem:[#allocation0]]
  $region106: #{multi_head_attention.1} parent=0
    _
  %s19 = ssub.s32 1, %s17
  %s20 = scalar_select 0, %s19, %s17
  $region1: #{multi_head_attention.1} parent=0
    #allocation3 [shape = 'u8[8192]{0}', space=vmem, size = 0x2000, scoped, tag = 'input window, operand 1, single buffered']
    #allocation4 [shape = 's32[1]{0}', space=sflag, size = 0x4, scoped, tag = 'scoped memory for multi_head_attention.1']
    #allocation5 [shape = 's32[1]{0}', space=sflag, size = 0x4, scoped, tag = 'scoped memory for multi_head_attention.1']
    #allocation6 [shape = 'u8[8192]{0}', space=vmem, size = 0x2000, scoped, tag = 'input window, operand 2, single buffered']
    #allocation7 [shape = 's32[1]{0}', space=sflag, size = 0x4, scoped, tag = 'scoped memory for multi_head_attention.1']
    #allocation8 [shape = 'u8[512]{0}', space=vmem, size = 0x400, scoped, tag = 'input window, operand 5, single buffered']
    #allocation9 [shape = 'u8[512]{0}', space=vmem, size = 0x400, scoped, tag = 'input window, operand 7, single buffered']
    #allocation10 [shape = 's32[1]{0}', space=sflag, size = 0x4, scoped, tag = 'scoped memory for multi_head_attention.1']
    #allocation11 [shape = 'u8[512]{0}', space=vmem, size = 0x400, scoped, tag = 'input window, operand 9, single buffered']
    #allocation12 [shape = 'u8[512]{0}', space=vmem, size = 0x400, scoped, tag = 'input window, operand 11, single buffered']
    #allocation13 [shape = 's32[1]{0}', space=sflag, size = 0x4, scoped, tag = 'scoped memory for multi_head_attention.1']
    #allocation14 [shape = 'u8[512]{0}', space=vmem, size = 0x400, scoped, tag = 'input window, operand 12, single buffered']
    #allocation15 [shape = 'u8[512]{0}', space=vmem, size = 0x400, scoped, tag = 'input window, operand 13, single buffered']
    #allocation16 [shape = 's32[1]{0}', space=sflag, size = 0x4, scoped, tag = 'scoped memory for multi_head_attention.1']
    #allocation17 [shape = 'u8[8192]{0}', space=vmem, size = 0x2000, scoped, tag = 'output window, operand 0, single buffered']
    %21 = vsyncpa [#allocation4], 0
    %22 = vsyncpa [#allocation7], 0
    %23 = vsyncpa [#allocation10], 0
    %24 = vsyncpa [#allocation13], 0
    %25 = vsyncpa [#allocation16], 0
    %26 = vsyncpa [#allocation5], 0
    // Predicated region
    $region2: #{multi_head_attention.1} parent=1 // pred_check
      _
    $region3: #{multi_head_attention.1} parent=1 // pred_check_branch
      %28 = sbr.rel (0) target = $region5
    $region4: #{multi_head_attention.1} parent=1 // pred_region
      _
    $region5: #{multi_head_attention.1} parent=1 // pred_fallthru
      _
    // Predicated region
    $region6: #{multi_head_attention.1} parent=1 // pred_check
      _
    $region7: #{multi_head_attention.1} parent=1 // pred_check_branch
      %30 = sbr.rel (0) target = $region9
    $region8: #{multi_head_attention.1} parent=1 // pred_region
      %32 = vsyncadd [#allocation4], 0
      %s33 = sshll.u32 %s1, 4
      %s34 = int_to_ptr.hbm [resolvable:$true] %s33
      %s35 = sshll.u32 [#allocation3], 4
      %s36 = int_to_ptr.vmem [resolvable:$true] %s35
      %41 = dma.hbm_to_vmem [thread:$0]  %s34, 256, %s36, [#allocation4], 128, 128, 8
    $region9: #{multi_head_attention.1} parent=1 // pred_fallthru
      _
    // Predicated region
    $region10: #{multi_head_attention.1} parent=1 // pred_check
      _
    $region11: #{multi_head_attention.1} parent=1 // pred_check_branch
      %43 = sbr.rel (0) target = $region13
    $region12: #{multi_head_attention.1} parent=1 // pred_region
      %45 = vsyncadd [#allocation7], 0
      %s46 = sshll.u32 %s2, 4
      %s47 = int_to_ptr.hbm [resolvable:$true] %s46
      %s48 = sshll.u32 [#allocation6], 4
      %s49 = int_to_ptr.vmem [resolvable:$true] %s48
      %54 = dma.hbm_to_vmem [thread:$0]  %s47, 256, %s49, [#allocation7], 128, 128, 8
    $region13: #{multi_head_attention.1} parent=1 // pred_fallthru
      _
    // Predicated region
    $region14: #{multi_head_attention.1} parent=1 // pred_check
      _
    $region15: #{multi_head_attention.1} parent=1 // pred_check_branch
      %56 = sbr.rel (0) target = $region17
    $region16: #{multi_head_attention.1} parent=1 // pred_region
      _
    $region17: #{multi_head_attention.1} parent=1 // pred_fallthru
      _
    // Predicated region
    $region18: #{multi_head_attention.1} parent=1 // pred_check
      _
    $region19: #{multi_head_attention.1} parent=1 // pred_check_branch
      %58 = sbr.rel (0) target = $region21
    $region20: #{multi_head_attention.1} parent=1 // pred_region
      _
    $region21: #{multi_head_attention.1} parent=1 // pred_fallthru
      _
    // Predicated region
    $region22: #{multi_head_attention.1} parent=1 // pred_check
      _
    $region23: #{multi_head_attention.1} parent=1 // pred_check_branch
      %60 = sbr.rel (0) target = $region25
    $region24: #{multi_head_attention.1} parent=1 // pred_region
      %62 = vsyncadd [#allocation7], 0
      %s64 = sshll.u32 %s5, 4
      %s65 = int_to_ptr.hbm [resolvable:$true] %s64
      %s66 = sshll.u32 [#allocation8], 4
      %s67 = int_to_ptr.vmem [resolvable:$true] %s66
      %69 = dma.hbm_to_vmem [thread:$0]  %s65, 16, %s67, [#allocation7]
    $region25: #{multi_head_attention.1} parent=1 // pred_fallthru
      _
    // Predicated region
    $region26: #{multi_head_attention.1} parent=1 // pred_check
      _
    $region27: #{multi_head_attention.1} parent=1 // pred_check_branch
      %71 = sbr.rel (0) target = $region29
    $region28: #{multi_head_attention.1} parent=1 // pred_region
      _
    $region29: #{multi_head_attention.1} parent=1 // pred_fallthru
      _
    // Predicated region
    $region30: #{multi_head_attention.1} parent=1 // pred_check
      _
    $region31: #{multi_head_attention.1} parent=1 // pred_check_branch
      %73 = sbr.rel (0) target = $region33
    $region32: #{multi_head_attention.1} parent=1 // pred_region
      %75 = vsyncadd [#allocation10], 0
      %s77 = sshll.u32 %s7, 4
      %s78 = int_to_ptr.hbm [resolvable:$true] %s77
      %s79 = sshll.u32 [#allocation9], 4
      %s80 = int_to_ptr.vmem [resolvable:$true] %s79
      %82 = dma.hbm_to_vmem [thread:$0]  %s78, 16, %s80, [#allocation10]
    $region33: #{multi_head_attention.1} parent=1 // pred_fallthru
      _
    // Predicated region
    $region34: #{multi_head_attention.1} parent=1 // pred_check
      _
    $region35: #{multi_head_attention.1} parent=1 // pred_check_branch
      %84 = sbr.rel (0) target = $region37
    $region36: #{multi_head_attention.1} parent=1 // pred_region
      _
    $region37: #{multi_head_attention.1} parent=1 // pred_fallthru
      _
    // Predicated region
    $region38: #{multi_head_attention.1} parent=1 // pred_check
      _
    $region39: #{multi_head_attention.1} parent=1 // pred_check_branch
      %86 = sbr.rel (0) target = $region41
    $region40: #{multi_head_attention.1} parent=1 // pred_region
      %88 = vsyncadd [#allocation10], 0
      %s90 = sshll.u32 %s9, 4
      %s91 = int_to_ptr.hbm [resolvable:$true] %s90
      %s92 = sshll.u32 [#allocation11], 4
      %s93 = int_to_ptr.vmem [resolvable:$true] %s92
      %95 = dma.hbm_to_vmem [thread:$0]  %s91, 16, %s93, [#allocation10]
    $region41: #{multi_head_attention.1} parent=1 // pred_fallthru
      _
    // Predicated region
    $region42: #{multi_head_attention.1} parent=1 // pred_check
      _
    $region43: #{multi_head_attention.1} parent=1 // pred_check_branch
      %97 = sbr.rel (0) target = $region45
    $region44: #{multi_head_attention.1} parent=1 // pred_region
      _
    $region45: #{multi_head_attention.1} parent=1 // pred_fallthru
      _
    // Predicated region
    $region46: #{multi_head_attention.1} parent=1 // pred_check
      _
    $region47: #{multi_head_attention.1} parent=1 // pred_check_branch
      %99 = sbr.rel (0) target = $region49
    $region48: #{multi_head_attention.1} parent=1 // pred_region
      %101 = vsyncadd [#allocation13], 0
      %s103 = sshll.u32 %s11, 4
      %s104 = int_to_ptr.hbm [resolvable:$true] %s103
      %s105 = sshll.u32 [#allocation12], 4
      %s106 = int_to_ptr.vmem [resolvable:$true] %s105
      %108 = dma.hbm_to_vmem [thread:$0]  %s104, 16, %s106, [#allocation13]
    $region49: #{multi_head_attention.1} parent=1 // pred_fallthru
      _
    // Predicated region
    $region50: #{multi_head_attention.1} parent=1 // pred_check
      _
    $region51: #{multi_head_attention.1} parent=1 // pred_check_branch
      %110 = sbr.rel (0) target = $region53
    $region52: #{multi_head_attention.1} parent=1 // pred_region
      %112 = vsyncadd [#allocation13], 0
      %s114 = sshll.u32 %s12, 4
      %s115 = int_to_ptr.hbm [resolvable:$true] %s114
      %s116 = sshll.u32 [#allocation14], 4
      %s117 = int_to_ptr.vmem [resolvable:$true] %s116
      %119 = dma.hbm_to_vmem [thread:$0]  %s115, 16, %s117, [#allocation13]
    $region53: #{multi_head_attention.1} parent=1 // pred_fallthru
      _
    // Predicated region
    $region54: #{multi_head_attention.1} parent=1 // pred_check
      _
    $region55: #{multi_head_attention.1} parent=1 // pred_check_branch
      %121 = sbr.rel (0) target = $region57
    $region56: #{multi_head_attention.1} parent=1 // pred_region
      %123 = vsyncadd [#allocation16], 0
      %s125 = sshll.u32 %s13, 4
      %s126 = int_to_ptr.hbm [resolvable:$true] %s125
      %s127 = sshll.u32 [#allocation15], 4
      %s128 = int_to_ptr.vmem [resolvable:$true] %s127
      %130 = dma.hbm_to_vmem [thread:$0]  %s126, 16, %s128, [#allocation16]
    $region57: #{multi_head_attention.1} parent=1 // pred_fallthru
      _
    // Predicated region
    $region58: #{multi_head_attention.1} parent=1 // pred_check
      _
    $region59: #{multi_head_attention.1} parent=1 // pred_check_branch
      %132 = sbr.rel (0) target = $region61
    $region60: #{multi_head_attention.1} parent=1 // pred_region
      %134 = dma.done [#allocation4], 256
    $region61: #{multi_head_attention.1} parent=1 // pred_fallthru
      _
    // Predicated region
    $region62: #{multi_head_attention.1} parent=1 // pred_check
      _
    $region63: #{multi_head_attention.1} parent=1 // pred_check_branch
      %136 = sbr.rel (0) target = $region65
    $region64: #{multi_head_attention.1} parent=1 // pred_region
      %138 = dma.done [#allocation7], 256
    $region65: #{multi_head_attention.1} parent=1 // pred_fallthru
      _
    // Predicated region
    $region66: #{multi_head_attention.1} parent=1 // pred_check
      _
    $region67: #{multi_head_attention.1} parent=1 // pred_check_branch
      %140 = sbr.rel (0) target = $region69
    $region68: #{multi_head_attention.1} parent=1 // pred_region
      %142 = dma.done [#allocation7], 16
    $region69: #{multi_head_attention.1} parent=1 // pred_fallthru
      _
    // Predicated region
    $region70: #{multi_head_attention.1} parent=1 // pred_check
      _
    $region71: #{multi_head_attention.1} parent=1 // pred_check_branch
      %144 = sbr.rel (0) target = $region73
    $region72: #{multi_head_attention.1} parent=1 // pred_region
      %146 = dma.done [#allocation10], 16
    $region73: #{multi_head_attention.1} parent=1 // pred_fallthru
      _
    // Predicated region
    $region74: #{multi_head_attention.1} parent=1 // pred_check
      _
    $region75: #{multi_head_attention.1} parent=1 // pred_check_branch
      %148 = sbr.rel (0) target = $region77
    $region76: #{multi_head_attention.1} parent=1 // pred_region
      %150 = dma.done [#allocation10], 16
    $region77: #{multi_head_attention.1} parent=1 // pred_fallthru
      _
    // Predicated region
    $region78: #{multi_head_attention.1} parent=1 // pred_check
      _
    $region79: #{multi_head_attention.1} parent=1 // pred_check_branch
      %152 = sbr.rel (0) target = $region81
    $region80: #{multi_head_attention.1} parent=1 // pred_region
      %154 = dma.done [#allocation13], 16
    $region81: #{multi_head_attention.1} parent=1 // pred_fallthru
      _
    // Predicated region
    $region82: #{multi_head_attention.1} parent=1 // pred_check
      _
    $region83: #{multi_head_attention.1} parent=1 // pred_check_branch
      %156 = sbr.rel (0) target = $region85
    $region84: #{multi_head_attention.1} parent=1 // pred_region
      %158 = dma.done [#allocation13], 16
    $region85: #{multi_head_attention.1} parent=1 // pred_fallthru
      _
    // Predicated region
    $region86: #{multi_head_attention.1} parent=1 // pred_check
      _
    $region87: #{multi_head_attention.1} parent=1 // pred_check_branch
      %160 = sbr.rel (0) target = $region89
    $region88: #{multi_head_attention.1} parent=1 // pred_region
      %162 = dma.done [#allocation16], 16
    $region89: #{multi_head_attention.1} parent=1 // pred_fallthru
      _
    %v163 = vld [vmem:[%s0] sm:$0xff]
    %v164 = vld [vmem:[%s0 + $0x8] sm:$0xff]
    %v165 = vld [vmem:[%s4] sm:$0xff]
    %v166 = vld [vmem:[%s4 + $0x8] sm:$0xff]
    %v167 = vld [vmem:[%s4 + $0x10] sm:$0xff]
    %v168 = vld [vmem:[%s4 + $0x18] sm:$0xff]
    %v169 = vld [vmem:[#allocation8] sm:$0x1]
    %v171 = vperm.slane %v169, 0
    %vm173 = vcmask 261120
    %v175 = vsel %vm173, %v163, 0
    %v178 = vsel %vm173, %v164, 0
    %180 = vmatpush.msra.mxu0 0.0
    %181 = vmatpush.msra.mxu0 0.0
    %182 = vmatpush.msra.mxu0 0.0
    %183 = vmatpush.msra.mxu0 0.0
    %184 = vmatpush.msra.mxu0 0.0
    %185 = vmatpush.msra.mxu0 0.0
    %186 = vmatpush.msra.mxu0 0.0
    %187 = vmatpush.msra.mxu0 0.0
    %188 = vmatpush.msra.mxu0 0.0
    %189 = vmatpush.msra.mxu0 0.0
    %190 = vmatpush.msra.mxu0 0.0
    %191 = vmatpush.msra.mxu0 0.0
    %192 = vmatpush.msra.mxu0 %v168
    %193 = vmatpush.msra.mxu0 %v167
    %194 = vmatpush.msra.mxu0 %v166
    %195 = vmatpush.msra.mxu0 %v165
    %196 = vmatmul.f32.gmra.mxu0 %v175
    %v197 = vpop.f32.mrf.mxu0
    %v198 = vadd.f32 %v171, %v197
    %199 = vmatmul.f32.gmra.mxu0 %v178
    %v200 = vpop.f32.mrf.mxu0
    %v201 = vadd.f32 %v171, %v200
    %202 = vdwg.mxu0
    %v203 = vmul.f32 %v198, 0.35355338
    %v204 = vmul.f32 %v201, 0.35355338
    %v205 = vld [vmem:[#allocation3] sm:$0xff]
    %v206 = vld [vmem:[#allocation3 + $0x8] sm:$0xff]
    %v207 = vld [vmem:[%s6] sm:$0xff]
    %v208 = vld [vmem:[%s6 + $0x8] sm:$0xff]
    %v209 = vld [vmem:[%s6 + $0x10] sm:$0xff]
    %v210 = vld [vmem:[%s6 + $0x18] sm:$0xff]
    %v211 = vld [vmem:[#allocation9] sm:$0x1]
    %v213 = vperm.slane %v211, 0
    %v216 = vsel %vm173, %v205, 0
    %v219 = vsel %vm173, %v206, 0
    %221 = vmatpush.msra.mxu0 0.0
    %222 = vmatpush.msra.mxu0 0.0
    %223 = vmatpush.msra.mxu0 0.0
    %224 = vmatpush.msra.mxu0 0.0
    %225 = vmatpush.msra.mxu0 0.0
    %226 = vmatpush.msra.mxu0 0.0
    %227 = vmatpush.msra.mxu0 0.0
    %228 = vmatpush.msra.mxu0 0.0
    %229 = vmatpush.msra.mxu0 0.0
    %230 = vmatpush.msra.mxu0 0.0
    %231 = vmatpush.msra.mxu0 0.0
    %232 = vmatpush.msra.mxu0 0.0
    %233 = vmatpush.msra.mxu0 %v210
    %234 = vmatpush.msra.mxu0 %v209
    %235 = vmatpush.msra.mxu0 %v208
    %236 = vmatpush.msra.mxu0 %v207
    %237 = vmatmul.f32.gmra.mxu0 %v216
    %v238 = vpop.f32.mrf.mxu0
    %v239 = vadd.f32 %v213, %v238
    %240 = vmatmul.f32.gmra.mxu0 %v219
    %v241 = vpop.f32.mrf.mxu0
    %v242 = vadd.f32 %v213, %v241
    %243 = vdwg.mxu0
    %v244 = vld [vmem:[#allocation6] sm:$0xff]
    %v245 = vld [vmem:[#allocation6 + $0x8] sm:$0xff]
    %v246 = vld [vmem:[%s8] sm:$0xff]
    %v247 = vld [vmem:[%s8 + $0x8] sm:$0xff]
    %v248 = vld [vmem:[%s8 + $0x10] sm:$0xff]
    %v249 = vld [vmem:[%s8 + $0x18] sm:$0xff]
    %v250 = vld [vmem:[#allocation11] sm:$0x1]
    %v252 = vperm.slane %v250, 0
    %v255 = vsel %vm173, %v244, 0
    %v258 = vsel %vm173, %v245, 0
    %260 = vmatpush.msra.mxu0 0.0
    %261 = vmatpush.msra.mxu0 0.0
    %262 = vmatpush.msra.mxu0 0.0
    %263 = vmatpush.msra.mxu0 0.0
    %264 = vmatpush.msra.mxu0 0.0
    %265 = vmatpush.msra.mxu0 0.0
    %266 = vmatpush.msra.mxu0 0.0
    %267 = vmatpush.msra.mxu0 0.0
    %268 = vmatpush.msra.mxu0 0.0
    %269 = vmatpush.msra.mxu0 0.0
    %270 = vmatpush.msra.mxu0 0.0
    %271 = vmatpush.msra.mxu0 0.0
    %272 = vmatpush.msra.mxu0 %v249
    %273 = vmatpush.msra.mxu0 %v248
    %274 = vmatpush.msra.mxu0 %v247
    %275 = vmatpush.msra.mxu0 %v246
    %276 = vmatmul.f32.gmra.mxu0 %v255
    %v277 = vpop.f32.mrf.mxu0
    %v278 = vadd.f32 %v252, %v277
    %279 = vmatmul.f32.gmra.mxu0 %v258
    %v280 = vpop.f32.mrf.mxu0
    %v281 = vadd.f32 %v252, %v280
    %282 = vdwg.mxu0
    %v283 = vld [vmem:[%s3] sm:$0xff]
    %v284 = vld [vmem:[%s3 + $0x8] sm:$0xff]
    %vm285 = vcmask 64512
    %v287 = vsel %vm285, %v203, 0
    %v290 = vsel %vm285, %v204, 0
    %v293 = vsel %vm285, %v239, 0
    %v296 = vsel %vm285, %v242, 0
    %298 = vmatpush.xpose.msra.mxu0 0.0
    %299 = vmatpush.xpose.msra.mxu0 0.0
    %300 = vmatpush.xpose.msra.mxu0 0.0
    %301 = vmatpush.xpose.msra.mxu0 0.0
    %302 = vmatpush.xpose.msra.mxu0 0.0
    %303 = vmatpush.xpose.msra.mxu0 0.0
    %304 = vmatpush.xpose.msra.mxu0 0.0
    %305 = vmatpush.xpose.msra.mxu0 0.0
    %306 = vmatpush.xpose.msra.mxu0 0.0
    %307 = vmatpush.xpose.msra.mxu0 0.0
    %308 = vmatpush.xpose.msra.mxu0 0.0
    %309 = vmatpush.xpose.msra.mxu0 0.0
    %310 = vmatpush.xpose.msra.mxu0 0.0
    %311 = vmatpush.xpose.msra.mxu0 0.0
    %312 = vmatpush.xpose.msra.mxu0 %v296
    %313 = vmatpush.xpose.msra.mxu0 %v293
    %314 = vmatmul.f32.gmra.mxu0 %v287
    %v315 = vpop.f32.mrf.mxu0
    %v316 = vadd.f32 %v283, %v315
    %317 = vmatmul.f32.gmra.mxu0 %v290
    %v318 = vpop.f32.mrf.mxu0
    %v319 = vadd.f32 %v284, %v318
    %320 = vdwg.mxu0
    %vm321 = vcmask 130048
    %v322 = vsel %vm321, %v316, -inf
    %323 = vmax.xlane.f32.xlu0 %v322
    %v324 = vpop.xlane.xlu0 %323
    %v325 = vsel %vm321, %v319, -inf
    %326 = vmax.xlane.f32.xlu0 %v325
    %v327 = vpop.xlane.xlu0 %326
    %v328 = vsub.f32 %v316, %v324
    %v329 = vsub.f32 %v319, %v327
    %v330 = vmul.f32 %v328, 1.442695
    %v331 = vpow.pop %v330
    %v332 = vmul.f32 %v329, 1.442695
    %v333 = vpow.pop %v332
    %v334 = vsel %vm321, %v331, 0.0
    %335 = vadd.xlane.f32.xlu0 %v334
    %v336 = vpop.xlane.xlu0 %335
    %v337 = vsel %vm321, %v333, 0.0
    %338 = vadd.xlane.f32.xlu0 %v337
    %v339 = vpop.xlane.xlu0 %338
    %v340 = vrcp.pop %v336
    %v341 = vmul.f32 %v336, %v340
    %v342 = vsub.f32 1.0, %v341
    %v343 = vmul.f32 %v340, %v342
    %v344 = vadd.f32 %v340, %v343
    %vm345 = vweird.f32 %v336
    %vm346 = vweird.f32 %v340
    %vm347 = vmor %vm345, %vm346
    %v348 = vsel %vm347, %v340, %v344
    %v349 = vand.u32 2147483647, %v336
    %vm350 = vcmp.eq.f32.partialorder %v349, 8.507059e+37
    %v351 = vand.u32 %v336, 2147483648
    %v352 = vor.u32 1.1754944e-38, %v351
    %v353 = vsel %vm350, %v352, %v348
    %v354 = vmul.f32 %v331, %v353
    %v355 = vrcp.pop %v339
    %v356 = vmul.f32 %v339, %v355
    %v357 = vsub.f32 1.0, %v356
    %v358 = vmul.f32 %v355, %v357
    %v359 = vadd.f32 %v355, %v358
    %vm360 = vweird.f32 %v339
    %vm361 = vweird.f32 %v355
    %vm362 = vmor %vm360, %vm361
    %v363 = vsel %vm362, %v355, %v359
    %v364 = vand.u32 2147483647, %v339
    %vm365 = vcmp.eq.f32.partialorder %v364, 8.507059e+37
    %v366 = vand.u32 %v339, 2147483648
    %v367 = vor.u32 1.1754944e-38, %v366
    %v368 = vsel %vm365, %v367, %v363
    %v369 = vmul.f32 %v333, %v368
    %370 = vst.msk [vmem:[%s15] sm:$0xff] %vm321, %v354
    %371 = vst.msk [vmem:[%s15 + $0x8] sm:$0xff] %vm321, %v369
    %v373 = vsel %vm321, %v354, 0
    %v376 = vsel %vm321, %v369, 0
    %378 = vmatpush.msra.mxu0 0.0
    %379 = vmatpush.msra.mxu0 0.0
    %380 = vmatpush.msra.mxu0 0.0
    %381 = vmatpush.msra.mxu0 0.0
    %382 = vmatpush.msra.mxu0 0.0
    %383 = vmatpush.msra.mxu0 0.0
    %384 = vmatpush.msra.mxu0 0.0
    %385 = vmatpush.msra.mxu0 0.0
    %386 = vmatpush.msra.mxu0 0.0
    %387 = vmatpush.msra.mxu0 0.0
    %388 = vmatpush.msra.mxu0 0.0
    %389 = vmatpush.msra.mxu0 0.0
    %390 = vmatpush.msra.mxu0 0.0
    %391 = vmatpush.msra.mxu0 0.0
    %392 = vmatpush.msra.mxu0 %v281
    %393 = vmatpush.msra.mxu0 %v278
    %394 = vmatmul.f32.gmra.mxu0 %v373
    %v395 = vpop.f32.mrf.mxu0
    %v396 = vadd.f32 0.0, %v395
    %397 = vmatmul.f32.gmra.mxu0 %v376
    %v398 = vpop.f32.mrf.mxu0
    %v399 = vadd.f32 0.0, %v398
    %400 = vdwg.mxu0
    %401 = vst.msk [vmem:[#allocation2] sm:$0xff] %vm285, %v396
    %402 = vst.msk [vmem:[#allocation2 + $0x8] sm:$0xff] %vm285, %v399
    %403 = vrot.lane.b32.xlu0 %v203, 120
    %v404 = vpop.permute.xlu0 %403
    %405 = vrot.lane.b32.xlu0 %v204, 120
    %v406 = vpop.permute.xlu0 %405
    %407 = vrot.lane.b32.xlu0 %v239, 120
    %v408 = vpop.permute.xlu0 %407
    %409 = vrot.lane.b32.xlu0 %v242, 120
    %v410 = vpop.permute.xlu0 %409
    %v411 = vsel %vm285, %v404, 0
    %v413 = vsel %vm285, %v406, 0
    %v415 = vsel %vm285, %v408, 0
    %v417 = vsel %vm285, %v410, 0
    %419 = vmatpush.xpose.msra.mxu0 0.0
    %420 = vmatpush.xpose.msra.mxu0 0.0
    %421 = vmatpush.xpose.msra.mxu0 0.0
    %422 = vmatpush.xpose.msra.mxu0 0.0
    %423 = vmatpush.xpose.msra.mxu0 0.0
    %424 = vmatpush.xpose.msra.mxu0 0.0
    %425 = vmatpush.xpose.msra.mxu0 0.0
    %426 = vmatpush.xpose.msra.mxu0 0.0
    %427 = vmatpush.xpose.msra.mxu0 0.0
    %428 = vmatpush.xpose.msra.mxu0 0.0
    %429 = vmatpush.xpose.msra.mxu0 0.0
    %430 = vmatpush.xpose.msra.mxu0 0.0
    %431 = vmatpush.xpose.msra.mxu0 0.0
    %432 = vmatpush.xpose.msra.mxu0 0.0
    %433 = vmatpush.xpose.msra.mxu0 %v417
    %434 = vmatpush.xpose.msra.mxu0 %v415
    %435 = vmatmul.f32.gmra.mxu0 %v411
    %v436 = vpop.f32.mrf.mxu0
    %v437 = vadd.f32 %v283, %v436
    %438 = vmatmul.f32.gmra.mxu0 %v413
    %v439 = vpop.f32.mrf.mxu0
    %v440 = vadd.f32 %v284, %v439
    %441 = vdwg.mxu0
    %v442 = vsel %vm321, %v437, -inf
    %443 = vmax.xlane.f32.xlu0 %v442
    %v444 = vpop.xlane.xlu0 %443
    %v445 = vsel %vm321, %v440, -inf
    %446 = vmax.xlane.f32.xlu0 %v445
    %v447 = vpop.xlane.xlu0 %446
    %v448 = vsub.f32 %v437, %v444
    %v449 = vsub.f32 %v440, %v447
    %v450 = vmul.f32 %v448, 1.442695
    %v451 = vpow.pop %v450
    %v452 = vmul.f32 %v449, 1.442695
    %v453 = vpow.pop %v452
    %v454 = vsel %vm321, %v451, 0.0
    %455 = vadd.xlane.f32.xlu0 %v454
    %v456 = vpop.xlane.xlu0 %455
    %v457 = vsel %vm321, %v453, 0.0
    %458 = vadd.xlane.f32.xlu0 %v457
    %v459 = vpop.xlane.xlu0 %458
    %v460 = vrcp.pop %v456
    %v461 = vmul.f32 %v456, %v460
    %v462 = vsub.f32 1.0, %v461
    %v463 = vmul.f32 %v460, %v462
    %v464 = vadd.f32 %v460, %v463
    %vm465 = vweird.f32 %v456
    %vm466 = vweird.f32 %v460
    %vm467 = vmor %vm465, %vm466
    %v468 = vsel %vm467, %v460, %v464
    %v469 = vand.u32 2147483647, %v456
    %vm470 = vcmp.eq.f32.partialorder %v469, 8.507059e+37
    %v471 = vand.u32 %v456, 2147483648
    %v472 = vor.u32 1.1754944e-38, %v471
    %v473 = vsel %vm470, %v472, %v468
    %v474 = vmul.f32 %v451, %v473
    %v475 = vrcp.pop %v459
    %v476 = vmul.f32 %v459, %v475
    %v477 = vsub.f32 1.0, %v476
    %v478 = vmul.f32 %v475, %v477
    %v479 = vadd.f32 %v475, %v478
    %vm480 = vweird.f32 %v459
    %vm481 = vweird.f32 %v475
    %vm482 = vmor %vm480, %vm481
    %v483 = vsel %vm482, %v475, %v479
    %v484 = vand.u32 2147483647, %v459
    %vm485 = vcmp.eq.f32.partialorder %v484, 8.507059e+37
    %v486 = vand.u32 %v459, 2147483648
    %v487 = vor.u32 1.1754944e-38, %v486
    %v488 = vsel %vm485, %v487, %v483
    %v489 = vmul.f32 %v453, %v488
    %492 = vrot.lane.b32.xlu0 %v474, 16
    %v493 = vpop.permute.xlu0 %492
    %494 = vrot.lane.b32.xlu0 %v489, 16
    %v495 = vpop.permute.xlu0 %494
    %vm498 = vcmask 261248
    %499 = vst.msk [vmem:[%s15] sm:$0xff] %vm498, %v493
    %500 = vst.msk [vmem:[%s15 + $0x8] sm:$0xff] %vm498, %v495
    %503 = vrot.lane.b32.xlu0 %v278, 120
    %v504 = vpop.permute.xlu0 %503
    %505 = vrot.lane.b32.xlu0 %v281, 120
    %v506 = vpop.permute.xlu0 %505
    %v509 = vsel %vm321, %v474, 0
    %v511 = vsel %vm321, %v489, 0
    %513 = vmatpush.msra.mxu0 0.0
    %514 = vmatpush.msra.mxu0 0.0
    %515 = vmatpush.msra.mxu0 0.0
    %516 = vmatpush.msra.mxu0 0.0
    %517 = vmatpush.msra.mxu0 0.0
    %518 = vmatpush.msra.mxu0 0.0
    %519 = vmatpush.msra.mxu0 0.0
    %520 = vmatpush.msra.mxu0 0.0
    %521 = vmatpush.msra.mxu0 0.0
    %522 = vmatpush.msra.mxu0 0.0
    %523 = vmatpush.msra.mxu0 0.0
    %524 = vmatpush.msra.mxu0 0.0
    %525 = vmatpush.msra.mxu0 0.0
    %526 = vmatpush.msra.mxu0 0.0
    %527 = vmatpush.msra.mxu0 %v506
    %528 = vmatpush.msra.mxu0 %v504
    %529 = vmatmul.f32.gmra.mxu0 %v509
    %v530 = vpop.f32.mrf.mxu0
    %v531 = vadd.f32 0.0, %v530
    %532 = vmatmul.f32.gmra.mxu0 %v511
    %v533 = vpop.f32.mrf.mxu0
    %v534 = vadd.f32 0.0, %v533
    %535 = vdwg.mxu0
    %538 = vrot.lane.b32.xlu0 %v531, 8
    %v539 = vpop.permute.xlu0 %538
    %540 = vrot.lane.b32.xlu0 %v534, 8
    %v541 = vpop.permute.xlu0 %540
    %vm544 = vcmask 130112
    %545 = vst.msk [vmem:[#allocation2] sm:$0xff] %vm544, %v539
    %546 = vst.msk [vmem:[#allocation2 + $0x8] sm:$0xff] %vm544, %v541
    %547 = vrot.lane.b32.xlu0 %v203, 112
    %v548 = vpop.permute.xlu0 %547
    %549 = vrot.lane.b32.xlu0 %v204, 112
    %v550 = vpop.permute.xlu0 %549
    %551 = vrot.lane.b32.xlu0 %v239, 112
    %v552 = vpop.permute.xlu0 %551
    %553 = vrot.lane.b32.xlu0 %v242, 112
    %v554 = vpop.permute.xlu0 %553
    %v555 = vsel %vm285, %v548, 0
    %v557 = vsel %vm285, %v550, 0
    %v559 = vsel %vm285, %v552, 0
    %v561 = vsel %vm285, %v554, 0
    %563 = vmatpush.xpose.msra.mxu0 0.0
    %564 = vmatpush.xpose.msra.mxu0 0.0
    %565 = vmatpush.xpose.msra.mxu0 0.0
    %566 = vmatpush.xpose.msra.mxu0 0.0
    %567 = vmatpush.xpose.msra.mxu0 0.0
    %568 = vmatpush.xpose.msra.mxu0 0.0
    %569 = vmatpush.xpose.msra.mxu0 0.0
    %570 = vmatpush.xpose.msra.mxu0 0.0
    %571 = vmatpush.xpose.msra.mxu0 0.0
    %572 = vmatpush.xpose.msra.mxu0 0.0
    %573 = vmatpush.xpose.msra.mxu0 0.0
    %574 = vmatpush.xpose.msra.mxu0 0.0
    %575 = vmatpush.xpose.msra.mxu0 0.0
    %576 = vmatpush.xpose.msra.mxu0 0.0
    %577 = vmatpush.xpose.msra.mxu0 %v561
    %578 = vmatpush.xpose.msra.mxu0 %v559
    %579 = vmatmul.f32.gmra.mxu0 %v555
    %v580 = vpop.f32.mrf.mxu0
    %v581 = vadd.f32 %v283, %v580
    %582 = vmatmul.f32.gmra.mxu0 %v557
    %v583 = vpop.f32.mrf.mxu0
    %v584 = vadd.f32 %v284, %v583
    %585 = vdwg.mxu0
    %v586 = vsel %vm321, %v581, -inf
    %587 = vmax.xlane.f32.xlu0 %v586
    %v588 = vpop.xlane.xlu0 %587
    %v589 = vsel %vm321, %v584, -inf
    %590 = vmax.xlane.f32.xlu0 %v589
    %v591 = vpop.xlane.xlu0 %590
    %v592 = vsub.f32 %v581, %v588
    %v593 = vsub.f32 %v584, %v591
    %v594 = vmul.f32 %v592, 1.442695
    %v595 = vpow.pop %v594
    %v596 = vmul.f32 %v593, 1.442695
    %v597 = vpow.pop %v596
    %v598 = vsel %vm321, %v595, 0.0
    %599 = vadd.xlane.f32.xlu0 %v598
    %v600 = vpop.xlane.xlu0 %599
    %v601 = vsel %vm321, %v597, 0.0
    %602 = vadd.xlane.f32.xlu0 %v601
    %v603 = vpop.xlane.xlu0 %602
    %v604 = vrcp.pop %v600
    %v605 = vmul.f32 %v600, %v604
    %v606 = vsub.f32 1.0, %v605
    %v607 = vmul.f32 %v604, %v606
    %v608 = vadd.f32 %v604, %v607
    %vm609 = vweird.f32 %v600
    %vm610 = vweird.f32 %v604
    %vm611 = vmor %vm609, %vm610
    %v612 = vsel %vm611, %v604, %v608
    %v613 = vand.u32 2147483647, %v600
    %vm614 = vcmp.eq.f32.partialorder %v613, 8.507059e+37
    %v615 = vand.u32 %v600, 2147483648
    %v616 = vor.u32 1.1754944e-38, %v615
    %v617 = vsel %vm614, %v616, %v612
    %v618 = vmul.f32 %v595, %v617
    %v619 = vrcp.pop %v603
    %v620 = vmul.f32 %v603, %v619
    %v621 = vsub.f32 1.0, %v620
    %v622 = vmul.f32 %v619, %v621
    %v623 = vadd.f32 %v619, %v622
    %vm624 = vweird.f32 %v603
    %vm625 = vweird.f32 %v619
    %vm626 = vmor %vm624, %vm625
    %v627 = vsel %vm626, %v619, %v623
    %v628 = vand.u32 2147483647, %v603
    %vm629 = vcmp.eq.f32.partialorder %v628, 8.507059e+37
    %v630 = vand.u32 %v603, 2147483648
    %v631 = vor.u32 1.1754944e-38, %v630
    %v632 = vsel %vm629, %v631, %v627
    %v633 = vmul.f32 %v597, %v632
    %636 = vrot.lane.b32.xlu0 %v618, 32
    %v637 = vpop.permute.xlu0 %636
    %638 = vrot.lane.b32.xlu0 %v633, 32
    %v639 = vpop.permute.xlu0 %638
    %vm642 = vcmask 392448
    %643 = vst.msk [vmem:[%s15] sm:$0xff] %vm642, %v637
    %644 = vst.msk [vmem:[%s15 + $0x8] sm:$0xff] %vm642, %v639
    %645 = vrot.lane.b32.xlu0 %v278, 112
    %v646 = vpop.permute.xlu0 %645
    %647 = vrot.lane.b32.xlu0 %v281, 112
    %v648 = vpop.permute.xlu0 %647
    %v651 = vsel %vm321, %v618, 0
    %v653 = vsel %vm321, %v633, 0
    %655 = vmatpush.msra.mxu0 0.0
    %656 = vmatpush.msra.mxu0 0.0
    %657 = vmatpush.msra.mxu0 0.0
    %658 = vmatpush.msra.mxu0 0.0
    %659 = vmatpush.msra.mxu0 0.0
    %660 = vmatpush.msra.mxu0 0.0
    %661 = vmatpush.msra.mxu0 0.0
    %662 = vmatpush.msra.mxu0 0.0
    %663 = vmatpush.msra.mxu0 0.0
    %664 = vmatpush.msra.mxu0 0.0
    %665 = vmatpush.msra.mxu0 0.0
    %666 = vmatpush.msra.mxu0 0.0
    %667 = vmatpush.msra.mxu0 0.0
    %668 = vmatpush.msra.mxu0 0.0
    %669 = vmatpush.msra.mxu0 %v648
    %670 = vmatpush.msra.mxu0 %v646
    %671 = vmatmul.f32.gmra.mxu0 %v651
    %v672 = vpop.f32.mrf.mxu0
    %v673 = vadd.f32 0.0, %v672
    %674 = vmatmul.f32.gmra.mxu0 %v653
    %v675 = vpop.f32.mrf.mxu0
    %v676 = vadd.f32 0.0, %v675
    %677 = vdwg.mxu0
    %680 = vrot.lane.b32.xlu0 %v673, 16
    %v681 = vpop.permute.xlu0 %680
    %682 = vrot.lane.b32.xlu0 %v676, 16
    %v683 = vpop.permute.xlu0 %682
    %vm686 = vcmask 195712
    %687 = vst.msk [vmem:[#allocation2] sm:$0xff] %vm686, %v681
    %688 = vst.msk [vmem:[#allocation2 + $0x8] sm:$0xff] %vm686, %v683
    %689 = vrot.lane.b32.xlu0 %v203, 104
    %v690 = vpop.permute.xlu0 %689
    %691 = vrot.lane.b32.xlu0 %v204, 104
    %v692 = vpop.permute.xlu0 %691
    %693 = vrot.lane.b32.xlu0 %v239, 104
    %v694 = vpop.permute.xlu0 %693
    %695 = vrot.lane.b32.xlu0 %v242, 104
    %v696 = vpop.permute.xlu0 %695
    %v697 = vsel %vm285, %v690, 0
    %v699 = vsel %vm285, %v692, 0
    %v701 = vsel %vm285, %v694, 0
    %v703 = vsel %vm285, %v696, 0
    %705 = vmatpush.xpose.msra.mxu0 0.0
    %706 = vmatpush.xpose.msra.mxu0 0.0
    %707 = vmatpush.xpose.msra.mxu0 0.0
    %708 = vmatpush.xpose.msra.mxu0 0.0
    %709 = vmatpush.xpose.msra.mxu0 0.0
    %710 = vmatpush.xpose.msra.mxu0 0.0
    %711 = vmatpush.xpose.msra.mxu0 0.0
    %712 = vmatpush.xpose.msra.mxu0 0.0
    %713 = vmatpush.xpose.msra.mxu0 0.0
    %714 = vmatpush.xpose.msra.mxu0 0.0
    %715 = vmatpush.xpose.msra.mxu0 0.0
    %716 = vmatpush.xpose.msra.mxu0 0.0
    %717 = vmatpush.xpose.msra.mxu0 0.0
    %718 = vmatpush.xpose.msra.mxu0 0.0
    %719 = vmatpush.xpose.msra.mxu0 %v703
    %720 = vmatpush.xpose.msra.mxu0 %v701
    %721 = vmatmul.f32.gmra.mxu0 %v697
    %v722 = vpop.f32.mrf.mxu0
    %v723 = vadd.f32 %v283, %v722
    %724 = vmatmul.f32.gmra.mxu0 %v699
    %v725 = vpop.f32.mrf.mxu0
    %v726 = vadd.f32 %v284, %v725
    %727 = vdwg.mxu0
    %v728 = vsel %vm321, %v723, -inf
    %729 = vmax.xlane.f32.xlu0 %v728
    %v730 = vpop.xlane.xlu0 %729
    %v731 = vsel %vm321, %v726, -inf
    %732 = vmax.xlane.f32.xlu0 %v731
    %v733 = vpop.xlane.xlu0 %732
    %v734 = vsub.f32 %v723, %v730
    %v735 = vsub.f32 %v726, %v733
    %v736 = vmul.f32 %v734, 1.442695
    %v737 = vpow.pop %v736
    %v738 = vmul.f32 %v735, 1.442695
    %v739 = vpow.pop %v738
    %v740 = vsel %vm321, %v737, 0.0
    %741 = vadd.xlane.f32.xlu0 %v740
    %v742 = vpop.xlane.xlu0 %741
    %v743 = vsel %vm321, %v739, 0.0
    %744 = vadd.xlane.f32.xlu0 %v743
    %v745 = vpop.xlane.xlu0 %744
    %v746 = vrcp.pop %v742
    %v747 = vmul.f32 %v742, %v746
    %v748 = vsub.f32 1.0, %v747
    %v749 = vmul.f32 %v746, %v748
    %v750 = vadd.f32 %v746, %v749
    %vm751 = vweird.f32 %v742
    %vm752 = vweird.f32 %v746
    %vm753 = vmor %vm751, %vm752
    %v754 = vsel %vm753, %v746, %v750
    %v755 = vand.u32 2147483647, %v742
    %vm756 = vcmp.eq.f32.partialorder %v755, 8.507059e+37
    %v757 = vand.u32 %v742, 2147483648
    %v758 = vor.u32 1.1754944e-38, %v757
    %v759 = vsel %vm756, %v758, %v754
    %v760 = vmul.f32 %v737, %v759
    %v761 = vrcp.pop %v745
    %v762 = vmul.f32 %v745, %v761
    %v763 = vsub.f32 1.0, %v762
    %v764 = vmul.f32 %v761, %v763
    %v765 = vadd.f32 %v761, %v764
    %vm766 = vweird.f32 %v745
    %vm767 = vweird.f32 %v761
    %vm768 = vmor %vm766, %vm767
    %v769 = vsel %vm768, %v761, %v765
    %v770 = vand.u32 2147483647, %v745
    %vm771 = vcmp.eq.f32.partialorder %v770, 8.507059e+37
    %v772 = vand.u32 %v745, 2147483648
    %v773 = vor.u32 1.1754944e-38, %v772
    %v774 = vsel %vm771, %v773, %v769
    %v775 = vmul.f32 %v739, %v774
    %778 = vrot.lane.b32.xlu0 %v760, 48
    %v779 = vpop.permute.xlu0 %778
    %780 = vrot.lane.b32.xlu0 %v775, 48
    %v781 = vpop.permute.xlu0 %780
    %vm784 = vcmask 523648
    %785 = vst.msk [vmem:[%s15] sm:$0xff] %vm784, %v779
    %786 = vst.msk [vmem:[%s15 + $0x8] sm:$0xff] %vm784, %v781
    %787 = vrot.lane.b32.xlu0 %v278, 104
    %v788 = vpop.permute.xlu0 %787
    %789 = vrot.lane.b32.xlu0 %v281, 104
    %v790 = vpop.permute.xlu0 %789
    %v793 = vsel %vm321, %v760, 0
    %v795 = vsel %vm321, %v775, 0
    %797 = vmatpush.msra.mxu0 0.0
    %798 = vmatpush.msra.mxu0 0.0
    %799 = vmatpush.msra.mxu0 0.0
    %800 = vmatpush.msra.mxu0 0.0
    %801 = vmatpush.msra.mxu0 0.0
    %802 = vmatpush.msra.mxu0 0.0
    %803 = vmatpush.msra.mxu0 0.0
    %804 = vmatpush.msra.mxu0 0.0
    %805 = vmatpush.msra.mxu0 0.0
    %806 = vmatpush.msra.mxu0 0.0
    %807 = vmatpush.msra.mxu0 0.0
    %808 = vmatpush.msra.mxu0 0.0
    %809 = vmatpush.msra.mxu0 0.0
    %810 = vmatpush.msra.mxu0 0.0
    %811 = vmatpush.msra.mxu0 %v790
    %812 = vmatpush.msra.mxu0 %v788
    %813 = vmatmul.f32.gmra.mxu0 %v793
    %v814 = vpop.f32.mrf.mxu0
    %v815 = vadd.f32 0.0, %v814
    %816 = vmatmul.f32.gmra.mxu0 %v795
    %v817 = vpop.f32.mrf.mxu0
    %v818 = vadd.f32 0.0, %v817
    %819 = vdwg.mxu0
    %822 = vrot.lane.b32.xlu0 %v815, 24
    %v823 = vpop.permute.xlu0 %822
    %824 = vrot.lane.b32.xlu0 %v818, 24
    %v825 = vpop.permute.xlu0 %824
    %vm828 = vcmask 261312
    %829 = vst.msk [vmem:[#allocation2] sm:$0xff] %vm828, %v823
    %830 = vst.msk [vmem:[#allocation2 + $0x8] sm:$0xff] %vm828, %v825
    %v831 = vld [vmem:[#allocation2] sm:$0xff]
    %v832 = vld [vmem:[#allocation2 + $0x8] sm:$0xff]
    %v833 = vld [vmem:[%s10] sm:$0xff]
    %v834 = vld [vmem:[%s10 + $0x8] sm:$0xff]
    %v835 = vld [vmem:[%s10 + $0x10] sm:$0xff]
    %v836 = vld [vmem:[%s10 + $0x18] sm:$0xff]
    %v837 = vld [vmem:[#allocation12] sm:$0x1]
    %v839 = vperm.slane %v837, 0
    %v842 = vsel %vm173, %v831, 0
    %v845 = vsel %vm173, %v832, 0
    %847 = vmatpush.msra.mxu0 0.0
    %848 = vmatpush.msra.mxu0 0.0
    %849 = vmatpush.msra.mxu0 0.0
    %850 = vmatpush.msra.mxu0 0.0
    %851 = vmatpush.msra.mxu0 0.0
    %852 = vmatpush.msra.mxu0 0.0
    %853 = vmatpush.msra.mxu0 0.0
    %854 = vmatpush.msra.mxu0 0.0
    %855 = vmatpush.msra.mxu0 0.0
    %856 = vmatpush.msra.mxu0 0.0
    %857 = vmatpush.msra.mxu0 0.0
    %858 = vmatpush.msra.mxu0 0.0
    %859 = vmatpush.msra.mxu0 %v836
    %860 = vmatpush.msra.mxu0 %v835
    %861 = vmatpush.msra.mxu0 %v834
    %862 = vmatpush.msra.mxu0 %v833
    %863 = vmatmul.f32.gmra.mxu0 %v842
    %v864 = vpop.f32.mrf.mxu0
    %v865 = vadd.f32 %v839, %v864
    %866 = vmatmul.f32.gmra.mxu0 %v845
    %v867 = vpop.f32.mrf.mxu0
    %v868 = vadd.f32 %v839, %v867
    %869 = vdwg.mxu0
    %v870 = vadd.f32 %v865, %v163
    %v871 = vadd.f32 %v868, %v164
    %v872 = vsel %vm173, %v870, 0.0
    %873 = vadd.xlane.f32.xlu0 %v872
    %v874 = vpop.xlane.xlu0 %873
    %v875 = vsel %vm173, %v871, 0.0
    %876 = vadd.xlane.f32.xlu0 %v875
    %v877 = vpop.xlane.xlu0 %876
    %v878 = vrcp.pop 32.0
    %v879 = vmul.f32 32.0, %v878
    %v880 = vsub.f32 1.0, %v879
    %v881 = vmul.f32 %v878, %v880
    %v882 = vadd.f32 %v878, %v881
    %vm883 = vweird.f32 %v878
    %v884 = vsel %vm883, %v878, %v882
    %v885 = vmul.f32 %v874, %v884
    %v886 = vmul.f32 %v877, %v884
    %v887 = vsub.f32 %v870, %v885
    %v888 = vsub.f32 %v871, %v886
    %v889 = vmul.f32 %v887, %v887
    %v890 = vmul.f32 %v888, %v888
    %v891 = vsel %vm173, %v889, 0.0
    %892 = vadd.xlane.f32.xlu0 %v891
    %v893 = vpop.xlane.xlu0 %892
    %v894 = vsel %vm173, %v890, 0.0
    %895 = vadd.xlane.f32.xlu0 %v894
    %v896 = vpop.xlane.xlu0 %895
    %v897 = vmul.f32 %v893, %v884
    %v898 = vmul.f32 %v896, %v884
    %v899 = vadd.f32 %v897, 1e-05
    %v900 = vadd.f32 %v898, 1e-05
    %v901 = vrsqrt.pop %v899
    %v902 = vmul.f32 %v901, %v899
    %v903 = vmul.f32 %v902, %v901
    %v904 = vmul.f32 0.5, %v903
    %v905 = vsub.f32 1.5, %v904
    %v906 = vmul.f32 %v901, %v905
    %vm907 = vweird.f32 %v899
    %vm908 = vweird.f32 %v901
    %vm909 = vmor %vm907, %vm908
    %v910 = vsel %vm909, %v901, %v906
    %v911 = vrsqrt.pop %v900
    %v912 = vmul.f32 %v911, %v900
    %v913 = vmul.f32 %v912, %v911
    %v914 = vmul.f32 0.5, %v913
    %v915 = vsub.f32 1.5, %v914
    %v916 = vmul.f32 %v911, %v915
    %vm917 = vweird.f32 %v900
    %vm918 = vweird.f32 %v911
    %vm919 = vmor %vm917, %vm918
    %v920 = vsel %vm919, %v911, %v916
    %v921 = vmul.f32 %v887, %v910
    %v922 = vmul.f32 %v888, %v920
    %v923 = vld [vmem:[#allocation14] sm:$0x1]
    %v925 = vperm.slane %v923, 0
    %v927 = vmul.f32 %v921, %v925
    %v928 = vmul.f32 %v922, %v925
    %v929 = vld [vmem:[#allocation15] sm:$0x1]
    %v931 = vperm.slane %v929, 0
    %v933 = vadd.f32 %v927, %v931
    %v934 = vadd.f32 %v928, %v931
    %935 = vst.msk [vmem:[#allocation17] sm:$0xff] %vm173, %v933
    %936 = vst.msk [vmem:[#allocation17 + $0x8] sm:$0xff] %vm173, %v934
    // Predicated region
    $region90: #{multi_head_attention.1} parent=1 // pred_check
      _
    $region91: #{multi_head_attention.1} parent=1 // pred_check_branch
      %938 = sbr.rel (0) target = $region93
    $region92: #{multi_head_attention.1} parent=1 // pred_region
      %940 = vsyncadd [#allocation5], 0
      %s941 = sshll.u32 [#allocation17], 4
      %s942 = int_to_ptr.vmem [resolvable:$true] %s941
      %s943 = sshll.u32 %s14, 4
      %s944 = int_to_ptr.hbm [resolvable:$true] %s943
      %949 = dma.vmem_to_hbm [thread:$0]  %s942, 256, %s944, [#allocation5], 128, 128, 8
    $region93: #{multi_head_attention.1} parent=1 // pred_fallthru
      _
    // Predicated region
    $region94: #{multi_head_attention.1} parent=1 // pred_check
      _
    $region95: #{multi_head_attention.1} parent=1 // pred_check_branch
      %951 = sbr.rel (0) target = $region97
    $region96: #{multi_head_attention.1} parent=1 // pred_region
      _
    $region97: #{multi_head_attention.1} parent=1 // pred_fallthru
      _
    // Predicated region
    $region98: #{multi_head_attention.1} parent=1 // pred_check
      _
    $region99: #{multi_head_attention.1} parent=1 // pred_check_branch
      %953 = sbr.rel (0) target = $region101
    $region100: #{multi_head_attention.1} parent=1 // pred_region
      %955 = dma.done [#allocation5], 256
    $region101: #{multi_head_attention.1} parent=1 // pred_fallthru
      _
    // Predicated region
    $region102: #{multi_head_attention.1} parent=1 // pred_check
      _
    $region103: #{multi_head_attention.1} parent=1 // pred_check_branch
      %957 = sbr.rel (0) target = $region105
    $region104: #{multi_head_attention.1} parent=1 // pred_region
      _
    $region105: #{multi_head_attention.1} parent=1 // pred_fallthru
      _
    %958 = vsyncpa [#allocation4], 1
    %959 = vsyncpa [#allocation7], 1
    %960 = vsyncpa [#allocation10], 1
    %961 = vsyncpa [#allocation13], 1
    %962 = vsyncpa [#allocation16], 1
    %963 = vsyncpa [#allocation5], 1

</llo_original>
